<compile_context>
chip_gen: v7x
topology: tpu7x:2x2x1
jax: 0.10.0
libtpu: 0.0.40
codegen_flags: <defaults>
</compile_context>

<pallas_src>
import math
import functools

import jax
import jax.numpy as jnp
from jax import lax
from jax.experimental import pallas as pl
from jax.experimental.pallas import tpu as pltpu


def _bert_attention_kernel(x_ref, mask_ref, wq_ref, wkv_ref, wo_ref,
                           gamma_ref, beta_ref, out_ref,
                           kv_scr, ctx_scr, *,
                           num_heads, head_size, q_tile, ln_eps):
    H = num_heads * head_size
    qi = pl.program_id(1)

    # --- K|V projection for the full sequence, once per batch element ------
    @pl.when(qi == 0)
    def _():
        x_full = x_ref[0]                                        # (S, H) bf16
        kv = jnp.dot(x_full, wkv_ref[...],
                     preferred_element_type=jnp.float32)          # (S, 2H) f32
        kv_scr[...] = kv.astype(kv_scr.dtype)                     # bf16 slab

    # --- Q projection for this query tile (scale folded into wq on host) ---
    q_start = pl.multiple_of(qi * q_tile, q_tile)
    x_tile = x_ref[0, pl.ds(q_start, q_tile), :]                  # (TQ, H) bf16
    q = jnp.dot(x_tile, wq_ref[...],
                preferred_element_type=jnp.float32)               # (TQ, H) f32
    q = q.astype(jnp.bfloat16)

    mask_bias = mask_ref[0, 0, :].astype(jnp.float32)[None, :]    # (1, S)

    # --- per-head attention; contexts written into one (TQ, H) slab --------
    for h in range(num_heads):
        lo = h * head_size
        hi = lo + head_size
        qh = q[:, lo:hi]                                          # (TQ, hd) bf16
        kh = kv_scr[:, lo:hi]                                     # (S,  hd) bf16
        vh = kv_scr[:, H + lo:H + hi]                             # (S,  hd) bf16

        # scores = qh @ kh^T without an explicit transpose.
        s = lax.dot_general(qh, kh,
                            dimension_numbers=(((1,), (1,)), ((), ())),
                            preferred_element_type=jnp.float32)   # (TQ, S) f32
        s = s + mask_bias

        # numerically-stable softmax with deferred normalization
        m = jnp.max(s, axis=-1, keepdims=True)
        e = jnp.exp(s - m)                                        # (TQ, S) f32
        denom = jnp.sum(e, axis=-1, keepdims=True)                # (TQ, 1) f32
        ctx_h = jnp.dot(e.astype(jnp.bfloat16), vh,
                        preferred_element_type=jnp.float32)       # (TQ, hd)
        ctx_h = ctx_h * pl.reciprocal(denom, approx=True)
        ctx_scr[:, lo:hi] = ctx_h.astype(ctx_scr.dtype)
    # TODO(synk): attention_probs dropout omitted (eval mode => identity)

    # --- output dense + residual + LayerNorm (stats in f32) ----------------
    y = jnp.dot(ctx_scr[...], wo_ref[...],
                preferred_element_type=jnp.float32)               # (TQ, H) f32
    # TODO(synk): hidden_states dropout omitted (eval mode => identity)
    y = y + x_tile.astype(jnp.float32)

    u = jnp.mean(y, axis=-1, keepdims=True)
    d = y - u
    var = jnp.mean(d * d, axis=-1, keepdims=True)
    normed = d * lax.rsqrt(var + ln_eps)
    out = (gamma_ref[0].astype(jnp.float32)[None, :] * normed
           + beta_ref[0].astype(jnp.float32)[None, :])
    out_ref[0] = out.astype(out_ref.dtype)


def _pick_q_tile(seq_len):
    if seq_len <= 256:
        return seq_len
    for t in (256, 128, 64, 32, 16, 8):
        if seq_len % t == 0:
            return t
    return seq_len


def bert_attention(x, mask, wq, wk, wv, wo, gamma, beta, *,
                   num_heads, ln_eps=1e-12, q_tile=None):
    """x: (B, S, H); mask: (B, 1, S) additive; weights: (H_in, H_out)."""
    B, S, H = x.shape
    head_size = H // num_heads

    if q_tile is None:
        q_tile = _pick_q_tile(S)
    assert S % q_tile == 0
    nq = S // q_tile

    # Host-side prep: fold score scale into Wq, fuse K|V weights, cast all
    # MXU operands to bf16 (halves weight/activation DMA + VMEM footprint).
    scale = 1.0 / math.sqrt(head_size)
    wq_s = (wq * scale).astype(jnp.bfloat16)
    wkv = jnp.concatenate([wk, wv], axis=1).astype(jnp.bfloat16)   # (H, 2H)
    wo_b = wo.astype(jnp.bfloat16)
    x_b = x.astype(jnp.bfloat16)
    mask_f = mask.astype(jnp.float32)
    gamma2 = gamma.reshape(1, H).astype(jnp.float32)
    beta2 = beta.reshape(1, H).astype(jnp.float32)

    kernel = functools.partial(
        _bert_attention_kernel,
        num_heads=num_heads, head_size=head_size,
        q_tile=q_tile, ln_eps=ln_eps)

    return pl.pallas_call(
        kernel,
        out_shape=jax.ShapeDtypeStruct((B, S, H), x.dtype),
        grid_spec=pltpu.PrefetchScalarGridSpec(
            num_scalar_prefetch=0,
            grid=(B, nq),
            in_specs=[
                pl.BlockSpec((1, S, H), lambda b, q: (b, 0, 0)),      # x (bf16)
                pl.BlockSpec((1, 1, S), lambda b, q: (b, 0, 0)),      # mask
                pl.BlockSpec((H, H), lambda b, q: (0, 0)),            # wq*scale
                pl.BlockSpec((H, 2 * H), lambda b, q: (0, 0)),        # [wk|wv]
                pl.BlockSpec((H, H), lambda b, q: (0, 0)),            # wo
                pl.BlockSpec((1, H), lambda b, q: (0, 0)),            # gamma
                pl.BlockSpec((1, H), lambda b, q: (0, 0)),            # beta
            ],
            out_specs=pl.BlockSpec((1, q_tile, H), lambda b, q: (b, q, 0)),
            scratch_shapes=[
                pltpu.VMEM((S, 2 * H), jnp.bfloat16),    # resident K|V slab
                pltpu.VMEM((q_tile, H), jnp.bfloat16),   # per-tile context slab
            ],
        ),
        compiler_params=pltpu.CompilerParams(
            dimension_semantics=("parallel", "arbitrary"),
            vmem_limit_bytes=48 * 1024 * 1024,
        ),
    )(x_b, mask_f, wq_s, wkv, wo_b, gamma2, beta2)


def bert_attention_ref(x, mask, wq, wk, wv, wo, gamma, beta, *,
                       num_heads, ln_eps=1e-12):
    """Pure-JAX f32 reference mirroring the PyTorch module semantics."""
    B, S, H = x.shape
    hd = H // num_heads
    q = (x @ wq).reshape(B, S, num_heads, hd).transpose(0, 2, 1, 3)
    k = (x @ wk).reshape(B, S, num_heads, hd).transpose(0, 2, 1, 3)
    v = (x @ wv).reshape(B, S, num_heads, hd).transpose(0, 2, 1, 3)
    scores = jnp.einsum('bnqd,bnkd->bnqk', q, k) / math.sqrt(hd)
    scores = scores + mask[:, None, :, :]
    probs = jax.nn.softmax(scores, axis=-1)
    ctx = jnp.einsum('bnqk,bnkd->bnqd', probs, v)
    ctx = ctx.transpose(0, 2, 1, 3).reshape(B, S, H)
    y = ctx @ wo + x
    u = jnp.mean(y, axis=-1, keepdims=True)
    s = jnp.mean((y - u) ** 2, axis=-1, keepdims=True)
    return gamma * ((y - u) / jnp.sqrt(s + ln_eps)) + beta


if __name__ == "__main__":
    # Small BERT-like config: hidden=32, heads=4, seq=8, batch=2
    B, S, H, NH = 2, 8, 32, 4

    key = jax.random.PRNGKey(0)
    k1, k2, k3, k4, k5, k6, k7 = jax.random.split(key, 7)

    x = jax.random.normal(k1, (B, S, H), dtype=jnp.float32)
    # additive attention mask: 0 for attend, -10000 for masked (BERT-style)
    mask_bits = (jax.random.uniform(k2, (B, 1, S)) > 0.2).astype(jnp.float32)
    attn_mask = (1.0 - mask_bits) * -10000.0

    scale = 0.02
    wq = scale * jax.random.normal(k3, (H, H), dtype=jnp.float32)
    wk = scale * jax.random.normal(k4, (H, H), dtype=jnp.float32)
    wv = scale * jax.random.normal(k5, (H, H), dtype=jnp.float32)
    wo = scale * jax.random.normal(k6, (H, H), dtype=jnp.float32)
    gamma = jnp.ones((H,), dtype=jnp.float32) + 0.1 * jax.random.normal(k7, (H,))
    beta = jnp.zeros((H,), dtype=jnp.float32)

    out = bert_attention(x, attn_mask, wq, wk, wv, wo, gamma, beta,
                         num_heads=NH)
    out = jax.block_until_ready(out)

    ref = bert_attention_ref(x, attn_mask, wq, wk, wv, wo, gamma, beta,
                             num_heads=NH)
    # bf16 MXU operands (per the perf review) => compare against the f32
    # reference with a bf16-appropriate tolerance; softmax/LN stats stay f32.
    assert jnp.allclose(out, ref, atol=5e-2, rtol=5e-2), "mismatch vs reference"

    print("KERNEL_OK")
</pallas_src>

<mosaic_0001>
module attributes {stable_mosaic.version = 11 : i64} {
  func.func @_bert_attention_kernel(%arg0: i32, %arg1: i32, %arg2: memref<1x8x32xbf16, #tpu.memory_space<vmem>>, %arg3: memref<1x1x8xf32, #tpu.memory_space<vmem>>, %arg4: memref<32x32xbf16, #tpu.memory_space<vmem>>, %arg5: memref<32x64xbf16, #tpu.memory_space<vmem>>, %arg6: memref<32x32xbf16, #tpu.memory_space<vmem>>, %arg7: memref<1x32xf32, #tpu.memory_space<vmem>>, %arg8: memref<1x32xf32, #tpu.memory_space<vmem>>, %arg9: memref<1x8x32xf32, #tpu.memory_space<vmem>>, %arg10: memref<8x64xbf16, #tpu.memory_space<vmem>>, %arg11: memref<8x32xbf16, #tpu.memory_space<vmem>>) attributes {dimension_semantics = [#tpu.dimension_semantics<parallel>, #tpu.dimension_semantics<arbitrary>], iteration_bounds = array<i64: 2, 1>, scalar_prefetch = 0 : i64, scratch_operands = 2 : i64, tpu.core_type = #tpu.core_type<tc>, window_params = [{transform_indices = @transform_0, window_bounds = array<i64: 1, 8, 32>}, {transform_indices = @transform_1, window_bounds = array<i64: 1, 1, 8>}, {pipeline_mode = #tpu.pipeline_mode<synchronous>, transform_indices = @transform_2, window_bounds = array<i64: 32, 32>}, {pipeline_mode = #tpu.pipeline_mode<synchronous>, transform_indices = @transform_3, window_bounds = array<i64: 32, 64>}, {pipeline_mode = #tpu.pipeline_mode<synchronous>, transform_indices = @transform_4, window_bounds = array<i64: 32, 32>}, {pipeline_mode = #tpu.pipeline_mode<synchronous>, transform_indices = @transform_5, window_bounds = array<i64: 1, 32>}, {pipeline_mode = #tpu.pipeline_mode<synchronous>, transform_indices = @transform_6, window_bounds = array<i64: 1, 32>}, {transform_indices = @transform_7, window_bounds = array<i64: 1, 8, 32>}]} {
    %c0_i32 = arith.constant 0 : i32
    %0 = arith.cmpi eq, %arg1, %c0_i32 : i32
    %1 = arith.extui %0 : i1 to i32
    %c0_i32_0 = arith.constant 0 : i32
    %2 = arith.cmpi ne, %1, %c0_i32_0 : i32
    scf.if %2 {
      %c0_57 = arith.constant 0 : index
      %c0_58 = arith.constant 0 : index
      %c0_59 = arith.constant 0 : index
      %128 = vector.load %arg2[%c0_57, %c0_58, %c0_59] : memref<1x8x32xbf16, #tpu.memory_space<vmem>>, vector<1x8x32xbf16>
      %129 = vector.shape_cast %128 : vector<1x8x32xbf16> to vector<8x32xbf16>
      %c0_60 = arith.constant 0 : index
      %c0_61 = arith.constant 0 : index
      %130 = vector.load %arg5[%c0_60, %c0_61] : memref<32x64xbf16, #tpu.memory_space<vmem>>, vector<32x64xbf16>
      %cst_62 = arith.constant dense<0.000000e+00> : vector<8x64xf32>
      %131 = tpu.matmul %129, %130, %cst_62 {dimension_numbers = #tpu.dot_dimension_numbers<[1], [0], [0], [1], [0, 0, 1, 1], [], []>} : vector<8x32xbf16>, vector<32x64xbf16>, vector<8x64xf32> -> vector<8x64xf32>
      %132 = arith.truncf %131 : vector<8x64xf32> to vector<8x64xbf16>
      %c0_63 = arith.constant 0 : index
      %c0_64 = arith.constant 0 : index
      %133 = vector.load %arg10[%c0_63, %c0_64] : memref<8x64xbf16, #tpu.memory_space<vmem>>, vector<8x64xbf16>
      tpu.vector_store %arg10[%c0_63, %c0_64], %132 {strides = array<i32>} : memref<8x64xbf16, #tpu.memory_space<vmem>>, vector<8x64xbf16>,
    } else {
    }
    %c8_i32 = arith.constant 8 : i32
    %3 = arith.muli %arg1, %c8_i32 : i32
    %4 = tpu.assume_multiple %3, 8 : i32
    %c0 = arith.constant 0 : index
    %5 = arith.index_cast %4 : i32 to index
    %c0_1 = arith.constant 0 : index
    %6 = vector.load %arg2[%c0, %5, %c0_1] : memref<1x8x32xbf16, #tpu.memory_space<vmem>>, vector<1x8x32xbf16>
    %7 = vector.shape_cast %6 : vector<1x8x32xbf16> to vector<8x32xbf16>
    %c0_2 = arith.constant 0 : index
    %c0_3 = arith.constant 0 : index
    %8 = vector.load %arg4[%c0_2, %c0_3] : memref<32x32xbf16, #tpu.memory_space<vmem>>, vector<32x32xbf16>
    %cst = arith.constant dense<0.000000e+00> : vector<8x32xf32>
    %9 = tpu.matmul %7, %8, %cst {dimension_numbers = #tpu.dot_dimension_numbers<[1], [0], [0], [1], [0, 0, 1, 1], [], []>} : vector<8x32xbf16>, vector<32x32xbf16>, vector<8x32xf32> -> vector<8x32xf32>
    %10 = arith.truncf %9 : vector<8x32xf32> to vector<8x32xbf16>
    %c0_4 = arith.constant 0 : index
    %c0_5 = arith.constant 0 : index
    %c0_6 = arith.constant 0 : index
    %11 = vector.load %arg3[%c0_4, %c0_5, %c0_6] : memref<1x1x8xf32, #tpu.memory_space<vmem>>, vector<1x1x8xf32>
    %12 = vector.shape_cast %11 : vector<1x1x8xf32> to vector<8xf32>
    %13 = vector.shape_cast %12 : vector<8xf32> to vector<1x8xf32>
    %14 = vector.extract_strided_slice %10 {offsets = [0, 0], sizes = [8, 8], strides = [1, 1]} : vector<8x32xbf16> to vector<8x8xbf16>
    %c0_7 = arith.constant 0 : index
    %c0_8 = arith.constant 0 : index
    %15 = vector.load %arg10[%c0_7, %c0_8] : memref<8x64xbf16, #tpu.memory_space<vmem>>, vector<8x8xbf16>
    %c0_9 = arith.constant 0 : index
    %c32 = arith.constant 32 : index
    %16 = vector.load %arg10[%c0_9, %c32] : memref<8x64xbf16, #tpu.memory_space<vmem>>, vector<8x8xbf16>
    %cst_10 = arith.constant dense<0.000000e+00> : vector<8x8xf32>
    %17 = tpu.matmul %14, %15, %cst_10 {dimension_numbers = #tpu.dot_dimension_numbers<[1], [1], [0], [0], [0, 0, 1, 0], [], []>} : vector<8x8xbf16>, vector<8x8xbf16>, vector<8x8xf32> -> vector<8x8xf32>
    %18 = vector.broadcast %13 : vector<1x8xf32> to vector<8x8xf32>
    %19 = arith.addf %17, %18 : vector<8x8xf32>
    %cst_11 = arith.constant dense<0xFF800000> : vector<8xf32>
    %20 = vector.multi_reduction <maximumf>, %19, %cst_11 [1] : vector<8x8xf32> to vector<8xf32>
    %21 = vector.shape_cast %20 : vector<8xf32> to vector<8x1xf32>
    %22 = vector.broadcast %21 : vector<8x1xf32> to vector<8x8xf32>
    %23 = arith.subf %19, %22 : vector<8x8xf32>
    %24 = math.exp %23 : vector<8x8xf32>
    %cst_12 = arith.constant dense<0.000000e+00> : vector<8xf32>
    %25 = vector.multi_reduction <add>, %24, %cst_12 [1] : vector<8x8xf32> to vector<8xf32>
    %26 = vector.shape_cast %25 : vector<8xf32> to vector<8x1xf32>
    %27 = arith.truncf %24 : vector<8x8xf32> to vector<8x8xbf16>
    %cst_13 = arith.constant dense<0.000000e+00> : vector<8x8xf32>
    %28 = tpu.matmul %27, %16, %cst_13 {dimension_numbers = #tpu.dot_dimension_numbers<[1], [0], [0], [1], [0, 0, 1, 1], [], []>} : vector<8x8xbf16>, vector<8x8xbf16>, vector<8x8xf32> -> vector<8x8xf32>
    %29 = tpu.reciprocal %26 {approx = true} : vector<8x1xf32> -> vector<8x1xf32>
    %30 = vector.broadcast %29 : vector<8x1xf32> to vector<8x8xf32>
    %31 = arith.mulf %28, %30 : vector<8x8xf32>
    %32 = arith.truncf %31 : vector<8x8xf32> to vector<8x8xbf16>
    %c0_14 = arith.constant 0 : index
    %c0_15 = arith.constant 0 : index
    %33 = vector.load %arg11[%c0_14, %c0_15] : memref<8x32xbf16, #tpu.memory_space<vmem>>, vector<8x8xbf16>
    tpu.vector_store %arg11[%c0_14, %c0_15], %32 {strides = array<i32>} : memref<8x32xbf16, #tpu.memory_space<vmem>>, vector<8x8xbf16>,
    %34 = vector.extract_strided_slice %10 {offsets = [0, 8], sizes = [8, 8], strides = [1, 1]} : vector<8x32xbf16> to vector<8x8xbf16>
    %c0_16 = arith.constant 0 : index
    %c8 = arith.constant 8 : index
    %35 = vector.load %arg10[%c0_16, %c8] : memref<8x64xbf16, #tpu.memory_space<vmem>>, vector<8x8xbf16>
    %c0_17 = arith.constant 0 : index
    %c40 = arith.constant 40 : index
    %36 = vector.load %arg10[%c0_17, %c40] : memref<8x64xbf16, #tpu.memory_space<vmem>>, vector<8x8xbf16>
    %cst_18 = arith.constant dense<0.000000e+00> : vector<8x8xf32>
    %37 = tpu.matmul %34, %35, %cst_18 {dimension_numbers = #tpu.dot_dimension_numbers<[1], [1], [0], [0], [0, 0, 1, 0], [], []>} : vector<8x8xbf16>, vector<8x8xbf16>, vector<8x8xf32> -> vector<8x8xf32>
    %38 = vector.broadcast %13 : vector<1x8xf32> to vector<8x8xf32>
    %39 = arith.addf %37, %38 : vector<8x8xf32>
    %cst_19 = arith.constant dense<0xFF800000> : vector<8xf32>
    %40 = vector.multi_reduction <maximumf>, %39, %cst_19 [1] : vector<8x8xf32> to vector<8xf32>
    %41 = vector.shape_cast %40 : vector<8xf32> to vector<8x1xf32>
    %42 = vector.broadcast %41 : vector<8x1xf32> to vector<8x8xf32>
    %43 = arith.subf %39, %42 : vector<8x8xf32>
    %44 = math.exp %43 : vector<8x8xf32>
    %cst_20 = arith.constant dense<0.000000e+00> : vector<8xf32>
    %45 = vector.multi_reduction <add>, %44, %cst_20 [1] : vector<8x8xf32> to vector<8xf32>
    %46 = vector.shape_cast %45 : vector<8xf32> to vector<8x1xf32>
    %47 = arith.truncf %44 : vector<8x8xf32> to vector<8x8xbf16>
    %cst_21 = arith.constant dense<0.000000e+00> : vector<8x8xf32>
    %48 = tpu.matmul %47, %36, %cst_21 {dimension_numbers = #tpu.dot_dimension_numbers<[1], [0], [0], [1], [0, 0, 1, 1], [], []>} : vector<8x8xbf16>, vector<8x8xbf16>, vector<8x8xf32> -> vector<8x8xf32>
    %49 = tpu.reciprocal %46 {approx = true} : vector<8x1xf32> -> vector<8x1xf32>
    %50 = vector.broadcast %49 : vector<8x1xf32> to vector<8x8xf32>
    %51 = arith.mulf %48, %50 : vector<8x8xf32>
    %52 = arith.truncf %51 : vector<8x8xf32> to vector<8x8xbf16>
    %c0_22 = arith.constant 0 : index
    %c8_23 = arith.constant 8 : index
    %53 = vector.load %arg11[%c0_22, %c8_23] : memref<8x32xbf16, #tpu.memory_space<vmem>>, vector<8x8xbf16>
    tpu.vector_store %arg11[%c0_22, %c8_23], %52 {strides = array<i32>} : memref<8x32xbf16, #tpu.memory_space<vmem>>, vector<8x8xbf16>,
    %54 = vector.extract_strided_slice %10 {offsets = [0, 16], sizes = [8, 8], strides = [1, 1]} : vector<8x32xbf16> to vector<8x8xbf16>
    %c0_24 = arith.constant 0 : index
    %c16 = arith.constant 16 : index
    %55 = vector.load %arg10[%c0_24, %c16] : memref<8x64xbf16, #tpu.memory_space<vmem>>, vector<8x8xbf16>
    %c0_25 = arith.constant 0 : index
    %c48 = arith.constant 48 : index
    %56 = vector.load %arg10[%c0_25, %c48] : memref<8x64xbf16, #tpu.memory_space<vmem>>, vector<8x8xbf16>
    %cst_26 = arith.constant dense<0.000000e+00> : vector<8x8xf32>
    %57 = tpu.matmul %54, %55, %cst_26 {dimension_numbers = #tpu.dot_dimension_numbers<[1], [1], [0], [0], [0, 0, 1, 0], [], []>} : vector<8x8xbf16>, vector<8x8xbf16>, vector<8x8xf32> -> vector<8x8xf32>
    %58 = vector.broadcast %13 : vector<1x8xf32> to vector<8x8xf32>
    %59 = arith.addf %57, %58 : vector<8x8xf32>
    %cst_27 = arith.constant dense<0xFF800000> : vector<8xf32>
    %60 = vector.multi_reduction <maximumf>, %59, %cst_27 [1] : vector<8x8xf32> to vector<8xf32>
    %61 = vector.shape_cast %60 : vector<8xf32> to vector<8x1xf32>
    %62 = vector.broadcast %61 : vector<8x1xf32> to vector<8x8xf32>
    %63 = arith.subf %59, %62 : vector<8x8xf32>
    %64 = math.exp %63 : vector<8x8xf32>
    %cst_28 = arith.constant dense<0.000000e+00> : vector<8xf32>
    %65 = vector.multi_reduction <add>, %64, %cst_28 [1] : vector<8x8xf32> to vector<8xf32>
    %66 = vector.shape_cast %65 : vector<8xf32> to vector<8x1xf32>
    %67 = arith.truncf %64 : vector<8x8xf32> to vector<8x8xbf16>
    %cst_29 = arith.constant dense<0.000000e+00> : vector<8x8xf32>
    %68 = tpu.matmul %67, %56, %cst_29 {dimension_numbers = #tpu.dot_dimension_numbers<[1], [0], [0], [1], [0, 0, 1, 1], [], []>} : vector<8x8xbf16>, vector<8x8xbf16>, vector<8x8xf32> -> vector<8x8xf32>
    %69 = tpu.reciprocal %66 {approx = true} : vector<8x1xf32> -> vector<8x1xf32>
    %70 = vector.broadcast %69 : vector<8x1xf32> to vector<8x8xf32>
    %71 = arith.mulf %68, %70 : vector<8x8xf32>
    %72 = arith.truncf %71 : vector<8x8xf32> to vector<8x8xbf16>
    %c0_30 = arith.constant 0 : index
    %c16_31 = arith.constant 16 : index
    %73 = vector.load %arg11[%c0_30, %c16_31] : memref<8x32xbf16, #tpu.memory_space<vmem>>, vector<8x8xbf16>
    tpu.vector_store %arg11[%c0_30, %c16_31], %72 {strides = array<i32>} : memref<8x32xbf16, #tpu.memory_space<vmem>>, vector<8x8xbf16>,
    %74 = vector.extract_strided_slice %10 {offsets = [0, 24], sizes = [8, 8], strides = [1, 1]} : vector<8x32xbf16> to vector<8x8xbf16>
    %c0_32 = arith.constant 0 : index
    %c24 = arith.constant 24 : index
    %75 = vector.load %arg10[%c0_32, %c24] : memref<8x64xbf16, #tpu.memory_space<vmem>>, vector<8x8xbf16>
    %c0_33 = arith.constant 0 : index
    %c56 = arith.constant 56 : index
    %76 = vector.load %arg10[%c0_33, %c56] : memref<8x64xbf16, #tpu.memory_space<vmem>>, vector<8x8xbf16>
    %cst_34 = arith.constant dense<0.000000e+00> : vector<8x8xf32>
    %77 = tpu.matmul %74, %75, %cst_34 {dimension_numbers = #tpu.dot_dimension_numbers<[1], [1], [0], [0], [0, 0, 1, 0], [], []>} : vector<8x8xbf16>, vector<8x8xbf16>, vector<8x8xf32> -> vector<8x8xf32>
    %78 = vector.broadcast %13 : vector<1x8xf32> to vector<8x8xf32>
    %79 = arith.addf %77, %78 : vector<8x8xf32>
    %cst_35 = arith.constant dense<0xFF800000> : vector<8xf32>
    %80 = vector.multi_reduction <maximumf>, %79, %cst_35 [1] : vector<8x8xf32> to vector<8xf32>
    %81 = vector.shape_cast %80 : vector<8xf32> to vector<8x1xf32>
    %82 = vector.broadcast %81 : vector<8x1xf32> to vector<8x8xf32>
    %83 = arith.subf %79, %82 : vector<8x8xf32>
    %84 = math.exp %83 : vector<8x8xf32>
    %cst_36 = arith.constant dense<0.000000e+00> : vector<8xf32>
    %85 = vector.multi_reduction <add>, %84, %cst_36 [1] : vector<8x8xf32> to vector<8xf32>
    %86 = vector.shape_cast %85 : vector<8xf32> to vector<8x1xf32>
    %87 = arith.truncf %84 : vector<8x8xf32> to vector<8x8xbf16>
    %cst_37 = arith.constant dense<0.000000e+00> : vector<8x8xf32>
    %88 = tpu.matmul %87, %76, %cst_37 {dimension_numbers = #tpu.dot_dimension_numbers<[1], [0], [0], [1], [0, 0, 1, 1], [], []>} : vector<8x8xbf16>, vector<8x8xbf16>, vector<8x8xf32> -> vector<8x8xf32>
    %89 = tpu.reciprocal %86 {approx = true} : vector<8x1xf32> -> vector<8x1xf32>
    %90 = vector.broadcast %89 : vector<8x1xf32> to vector<8x8xf32>
    %91 = arith.mulf %88, %90 : vector<8x8xf32>
    %92 = arith.truncf %91 : vector<8x8xf32> to vector<8x8xbf16>
    %c0_38 = arith.constant 0 : index
    %c24_39 = arith.constant 24 : index
    %93 = vector.load %arg11[%c0_38, %c24_39] : memref<8x32xbf16, #tpu.memory_space<vmem>>, vector<8x8xbf16>
    tpu.vector_store %arg11[%c0_38, %c24_39], %92 {strides = array<i32>} : memref<8x32xbf16, #tpu.memory_space<vmem>>, vector<8x8xbf16>,
    %c0_40 = arith.constant 0 : index
    %c0_41 = arith.constant 0 : index
    %94 = vector.load %arg11[%c0_40, %c0_41] : memref<8x32xbf16, #tpu.memory_space<vmem>>, vector<8x32xbf16>
    %c0_42 = arith.constant 0 : index
    %c0_43 = arith.constant 0 : index
    %95 = vector.load %arg6[%c0_42, %c0_43] : memref<32x32xbf16, #tpu.memory_space<vmem>>, vector<32x32xbf16>
    %cst_44 = arith.constant dense<0.000000e+00> : vector<8x32xf32>
    %96 = tpu.matmul %94, %95, %cst_44 {dimension_numbers = #tpu.dot_dimension_numbers<[1], [0], [0], [1], [0, 0, 1, 1], [], []>} : vector<8x32xbf16>, vector<32x32xbf16>, vector<8x32xf32> -> vector<8x32xf32>
    %97 = arith.extf %7 : vector<8x32xbf16> to vector<8x32xf32>
    %98 = arith.addf %96, %97 : vector<8x32xf32>
    %cst_45 = arith.constant dense<0.000000e+00> : vector<8xf32>
    %99 = vector.multi_reduction <add>, %98, %cst_45 [1] : vector<8x32xf32> to vector<8xf32>
    %100 = vector.shape_cast %99 : vector<8xf32> to vector<8x1xf32>
    %cst_46 = arith.constant 3.200000e+01 : f32
    %101 = vector.broadcast %cst_46 : f32 to vector<8x1xf32>
    %102 = arith.divf %100, %101 : vector<8x1xf32>
    %103 = vector.broadcast %102 : vector<8x1xf32> to vector<8x32xf32>
    %104 = arith.subf %98, %103 : vector<8x32xf32>
    %105 = arith.mulf %104, %104 : vector<8x32xf32>
    %cst_47 = arith.constant dense<0.000000e+00> : vector<8xf32>
    %106 = vector.multi_reduction <add>, %105, %cst_47 [1] : vector<8x32xf32> to vector<8xf32>
    %107 = vector.shape_cast %106 : vector<8xf32> to vector<8x1xf32>
    %cst_48 = arith.constant 3.200000e+01 : f32
    %108 = vector.broadcast %cst_48 : f32 to vector<8x1xf32>
    %109 = arith.divf %107, %108 : vector<8x1xf32>
    %cst_49 = arith.constant 9.99999996E-13 : f32
    %110 = vector.broadcast %cst_49 : f32 to vector<8x1xf32>
    %111 = arith.addf %109, %110 : vector<8x1xf32>
    %112 = math.rsqrt %111 : vector<8x1xf32>
    %113 = vector.broadcast %112 : vector<8x1xf32> to vector<8x32xf32>
    %114 = arith.mulf %104, %113 : vector<8x32xf32>
    %c0_50 = arith.constant 0 : index
    %c0_51 = arith.constant 0 : index
    %115 = vector.load %arg7[%c0_50, %c0_51] : memref<1x32xf32, #tpu.memory_space<vmem>>, vector<1x32xf32>
    %116 = vector.shape_cast %115 : vector<1x32xf32> to vector<32xf32>
    %117 = vector.shape_cast %116 : vector<32xf32> to vector<1x32xf32>
    %118 = vector.broadcast %117 : vector<1x32xf32> to vector<8x32xf32>
    %119 = arith.mulf %118, %114 : vector<8x32xf32>
    %c0_52 = arith.constant 0 : index
    %c0_53 = arith.constant 0 : index
    %120 = vector.load %arg8[%c0_52, %c0_53] : memref<1x32xf32, #tpu.memory_space<vmem>>, vector<1x32xf32>
    %121 = vector.shape_cast %120 : vector<1x32xf32> to vector<32xf32>
    %122 = vector.shape_cast %121 : vector<32xf32> to vector<1x32xf32>
    %123 = vector.broadcast %122 : vector<1x32xf32> to vector<8x32xf32>
    %124 = arith.addf %119, %123 : vector<8x32xf32>
    %c0_54 = arith.constant 0 : index
    %c0_55 = arith.constant 0 : index
    %c0_56 = arith.constant 0 : index
    %125 = vector.load %arg9[%c0_54, %c0_55, %c0_56] : memref<1x8x32xf32, #tpu.memory_space<vmem>>, vector<1x8x32xf32>
    %126 = vector.shape_cast %125 : vector<1x8x32xf32> to vector<8x32xf32>
    %127 = vector.shape_cast %124 : vector<8x32xf32> to vector<1x8x32xf32>
    tpu.vector_store %arg9[%c0_54, %c0_55, %c0_56], %127 {strides = array<i32>} : memref<1x8x32xf32, #tpu.memory_space<vmem>>, vector<1x8x32xf32>,
    return
  }
  func.func @transform_0(%arg0: i32, %arg1: i32) -> (i32, i32, i32) {
    %c0_i32 = arith.constant 0 : i32
    %c0_i32_0 = arith.constant 0 : i32
    %c0_i32_1 = arith.constant 0 : i32
    return %arg0, %c0_i32, %c0_i32_0 : i32, i32, i32
  }
  func.func @transform_1(%arg0: i32, %arg1: i32) -> (i32, i32, i32) {
    %c0_i32 = arith.constant 0 : i32
    %c0_i32_0 = arith.constant 0 : i32
    %c0_i32_1 = arith.constant 0 : i32
    return %arg0, %c0_i32, %c0_i32_0 : i32, i32, i32
  }
  func.func @transform_2(%arg0: i32, %arg1: i32) -> (i32, i32) {
    %c0_i32 = arith.constant 0 : i32
    %c0_i32_0 = arith.constant 0 : i32
    %c0_i32_1 = arith.constant 0 : i32
    return %c0_i32, %c0_i32_0 : i32, i32
  }
  func.func @transform_3(%arg0: i32, %arg1: i32) -> (i32, i32) {
    %c0_i32 = arith.constant 0 : i32
    %c0_i32_0 = arith.constant 0 : i32
    %c0_i32_1 = arith.constant 0 : i32
    return %c0_i32, %c0_i32_0 : i32, i32
  }
  func.func @transform_4(%arg0: i32, %arg1: i32) -> (i32, i32) {
    %c0_i32 = arith.constant 0 : i32
    %c0_i32_0 = arith.constant 0 : i32
    %c0_i32_1 = arith.constant 0 : i32
    return %c0_i32, %c0_i32_0 : i32, i32
  }
  func.func @transform_5(%arg0: i32, %arg1: i32) -> (i32, i32) {
    %c0_i32 = arith.constant 0 : i32
    %c0_i32_0 = arith.constant 0 : i32
    %c0_i32_1 = arith.constant 0 : i32
    return %c0_i32, %c0_i32_0 : i32, i32
  }
  func.func @transform_6(%arg0: i32, %arg1: i32) -> (i32, i32) {
    %c0_i32 = arith.constant 0 : i32
    %c0_i32_0 = arith.constant 0 : i32
    %c0_i32_1 = arith.constant 0 : i32
    return %c0_i32, %c0_i32_0 : i32, i32
  }
  func.func @transform_7(%arg0: i32, %arg1: i32) -> (i32, i32, i32) {
    %c0_i32 = arith.constant 0 : i32
    %c0_i32_0 = arith.constant 0 : i32
    return %arg0, %arg1, %c0_i32 : i32, i32, i32
  }
}

</mosaic_0001>

<llo_original>
// kernel: tpu_custom_call.1
$region0: #{tpu_custom_call.1}
  #allocation0 [shape = 'u32[]', space=smem, size = 0x4, offset = 0x4, fixed_abs, tag = 'smem constant byte address 0x4 - core index']
  #allocation1 [shape = 'u32[144,128]{1,0:T(1,128)}', space=vmem, size = 0x12000, scoped, tag = 'internal scratch']
  #allocation2 [shape = 'bf16[8,64]{1,0:T(8,128)(2,1)}', space=vmem, size = 0x800, scoped, tag = 'scratch operand']
  #allocation3 [shape = 'bf16[8,32]{1,0:T(8,128)(2,1)}', space=vmem, size = 0x800, scoped, tag = 'scratch operand']
  %s0 = inlined_call_operand.hbm [shape: bf16[2,8,32], index: 0, kind: input, shape index: {}]
  %s1 = inlined_call_operand.vmem [shape: f32[2,1,8], index: 1, kind: input, shape index: {}]
  %s2 = inlined_call_operand.hbm [shape: bf16[32,32], index: 2, kind: input, shape index: {}]
  %s3 = inlined_call_operand.hbm [shape: bf16[32,64], index: 3, kind: input, shape index: {}]
  %s4 = inlined_call_operand.hbm [shape: bf16[32,32], index: 4, kind: input, shape index: {}]
  %s5 = inlined_call_operand.vmem [shape: f32[1,32], index: 5, kind: input, shape index: {}]
  %s6 = inlined_call_operand.vmem [shape: f32[1,32], index: 6, kind: input, shape index: {}]
  %s7 = inlined_call_operand.hbm [shape: f32[2,8,32], index: 7, kind: output, shape index: {}]
  %s8 = sld [smem:[#allocation0]]
  $region81: #{tpu_custom_call.1} parent=0
    _
  %s10 = ssub.s32 1, %s8
  %s11 = scalar_select 0, %s10, %s8
  $region1: #{tpu_custom_call.1} parent=0
    #allocation4 [shape = 'u8[4096]{0}', space=vmem, size = 0x1000, scoped, tag = 'input window, operand 0']
    #allocation5 [shape = 's32[2]{0}', space=sflag, size = 0x8, scoped, tag = 'scoped memory for tpu_custom_call.1']
    #allocation6 [shape = 's32[2]{0}', space=sflag, size = 0x8, scoped, tag = 'scoped memory for tpu_custom_call.1']
    #allocation7 [shape = 'u8[8192]{0}', space=vmem, size = 0x2000, scoped, tag = 'input window, operand 2, single buffered']
    #allocation8 [shape = 's32[1]{0}', space=sflag, size = 0x4, scoped, tag = 'scoped memory for tpu_custom_call.1']
    #allocation9 [shape = 'u8[8192]{0}', space=vmem, size = 0x2000, scoped, tag = 'input window, operand 3, single buffered']
    #allocation10 [shape = 'u8[8192]{0}', space=vmem, size = 0x2000, scoped, tag = 'input window, operand 4, single buffered']
    #allocation11 [shape = 's32[1]{0}', space=sflag, size = 0x4, scoped, tag = 'scoped memory for tpu_custom_call.1']
    #allocation12 [shape = 'u8[8192]{0}', space=vmem, size = 0x2000, scoped, tag = 'output window, operand 0']
    %12 = vsyncpa [#allocation5], 0
    %s13 = scalar_lea.sflag [#allocation5], 1
    %14 = vsyncpa %s13, 0
    %15 = vsyncpa [#allocation8], 0
    %16 = vsyncpa [#allocation11], 0
    %17 = vsyncpa [#allocation6], 0
    %s18 = scalar_lea.sflag [#allocation6], 1
    %19 = vsyncpa %s18, 0
    loop: start=0, step=1, limit=4
    $region2: #{tpu_custom_call.1} parent=1 // loop_pre_header
      _
    $region3: #{tpu_custom_call.1} parent=1 // loop_header
      %s21 = sphi 0, %s25
      %p22 = scmp.ge.s32.totalorder %s21, 4
      %s28 = sphi 0, %s40
      %s29 = sphi 0, %s36
      %s30 = sphi 0, %s28
      %s31 = sphi 0, %s29
      %s32 = sphi 0, %s30
      %s33 = sphi 0, %s31
      %s43 = sphi 0, %s45
      %s46 = sphi 0, %s43
      %s47 = sphi 0, %s46
      %s63 = sphi 0, %s47
      %s69 = sphi 0, %s71
      %s72 = sphi 0, %s69
      %s73 = sphi 0, %s72
      %s89 = sphi 0, %s73
      %s93 = sphi 0, %s93
      %s95 = sphi 0, %s93
      %s96 = sphi 0, %s95
      %s110 = sphi 0, %s96
      %s114 = sphi 0, %s114
      %s116 = sphi 0, %s114
      %s117 = sphi 0, %s116
      %s131 = sphi 0, %s117
      %s135 = sphi 0, %s135
      %s137 = sphi 0, %s135
      %s138 = sphi 0, %s137
      %s152 = sphi 0, %s138
      %s156 = sphi 0, %s156
      %s158 = sphi 0, %s156
      %s159 = sphi 0, %s158
      %s173 = sphi 0, %s159
      %s177 = sphi 0, %s177
      %s179 = sphi 0, %s177
      %s180 = sphi 0, %s179
      %s194 = sphi 0, %s180
      %s202 = sphi 0, %s204
      %s205 = sphi 0, %s202
      %s206 = sphi 0, %s205
      %s222 = sphi 0, %s206
    $region4: #{tpu_custom_call.1} parent=1 // loop_header_branch
      %24 = sbr.rel (%p22) target = $region8
    $region5: #{tpu_custom_call.1} parent=1 // loop_body
      %s26 = ssub.s32 %s21, 1
      %s27 = ssub.s32 %s21, 2
      %s34 = sadd.s32 1, %s29
      %p35 = scmp.ge.s32.totalorder %s34, 1
      %s36 = scalar_select %p35, 0, %s34
      %s37 = sadd.s32 1, %s28
      %s38 = scalar_select %p35, %s37, %s28
      %p39 = scmp.ge.s32.totalorder %s38, 2
      %s40 = scalar_select %p39, 0, %s38
      %s41 = ssub.s32 %s28, %s40
      %p42 = scmp.eq.s32.totalorder %s41, 0
      %s44 = sadd.s32 %s43, 1
      %s45 = scalar_select %p42, %s43, %s44
      %p48 = pneg %p42
      %p49 = scmp.eq.s32.totalorder %s21, 1
      %p50 = por %p48, %p49
      %p51 = scmp.ne.s32.totalorder %s43, %s46
      %p52 = scmp.eq.s32.totalorder %s21, 0
      %p53 = por %p51, %p52
      %p54 = scmp.ne.s32.totalorder %s43, %s46
      %p55 = scmp.eq.s32.totalorder %s26, 1
      %p56 = por %p54, %p55
      %p57 = scmp.ne.s32.totalorder %s46, %s47
      %p58 = scmp.eq.s32.totalorder %s26, 0
      %p59 = por %p57, %p58
      %p60 = scmp.ne.s32.totalorder %s46, %s47
      %p61 = scmp.eq.s32.totalorder %s27, 1
      %p62 = por %p60, %p61
      %p64 = scmp.ne.s32.totalorder %s47, %s63
      %p65 = scmp.eq.s32.totalorder %s27, 0
      %p66 = por %p64, %p65
      %s67 = ssub.s32 %s28, %s40
      %p68 = scmp.eq.s32.totalorder %s67, 0
      %s70 = sadd.s32 %s69, 1
      %s71 = scalar_select %p68, %s69, %s70
      %p74 = pneg %p68
      %p75 = scmp.eq.s32.totalorder %s21, 1
      %p76 = por %p74, %p75
      %p77 = scmp.ne.s32.totalorder %s69, %s72
      %p78 = scmp.eq.s32.totalorder %s21, 0
      %p79 = por %p77, %p78
      %p80 = scmp.ne.s32.totalorder %s69, %s72
      %p81 = scmp.eq.s32.totalorder %s26, 1
      %p82 = por %p80, %p81
      %p83 = scmp.ne.s32.totalorder %s72, %s73
      %p84 = scmp.eq.s32.totalorder %s26, 0
      %p85 = por %p83, %p84
      %p86 = scmp.ne.s32.totalorder %s72, %s73
      %p87 = scmp.eq.s32.totalorder %s27, 1
      %p88 = por %p86, %p87
      %p90 = scmp.ne.s32.totalorder %s73, %s89
      %p91 = scmp.eq.s32.totalorder %s27, 0
      %p92 = por %p90, %p91
      %s94 = sadd.s32 %s93, 1
      %p97 = scmp.eq.s32.totalorder %s21, 1
      %p98 = scmp.ne.s32.totalorder %s93, %s95
      %p99 = scmp.eq.s32.totalorder %s21, 0
      %p100 = por %p98, %p99
      %p101 = scmp.ne.s32.totalorder %s93, %s95
      %p102 = scmp.eq.s32.totalorder %s26, 1
      %p103 = por %p101, %p102
      %p104 = scmp.ne.s32.totalorder %s95, %s96
      %p105 = scmp.eq.s32.totalorder %s26, 0
      %p106 = por %p104, %p105
      %p107 = scmp.ne.s32.totalorder %s95, %s96
      %p108 = scmp.eq.s32.totalorder %s27, 1
      %p109 = por %p107, %p108
      %p111 = scmp.ne.s32.totalorder %s96, %s110
      %p112 = scmp.eq.s32.totalorder %s27, 0
      %p113 = por %p111, %p112
      %s115 = sadd.s32 %s114, 1
      %p118 = scmp.eq.s32.totalorder %s21, 1
      %p119 = scmp.ne.s32.totalorder %s114, %s116
      %p120 = scmp.eq.s32.totalorder %s21, 0
      %p121 = por %p119, %p120
      %p122 = scmp.ne.s32.totalorder %s114, %s116
      %p123 = scmp.eq.s32.totalorder %s26, 1
      %p124 = por %p122, %p123
      %p125 = scmp.ne.s32.totalorder %s116, %s117
      %p126 = scmp.eq.s32.totalorder %s26, 0
      %p127 = por %p125, %p126
      %p128 = scmp.ne.s32.totalorder %s116, %s117
      %p129 = scmp.eq.s32.totalorder %s27, 1
      %p130 = por %p128, %p129
      %p132 = scmp.ne.s32.totalorder %s117, %s131
      %p133 = scmp.eq.s32.totalorder %s27, 0
      %p134 = por %p132, %p133
      %s136 = sadd.s32 %s135, 1
      %p139 = scmp.eq.s32.totalorder %s21, 1
      %p140 = scmp.ne.s32.totalorder %s135, %s137
      %p141 = scmp.eq.s32.totalorder %s21, 0
      %p142 = por %p140, %p141
      %p143 = scmp.ne.s32.totalorder %s135, %s137
      %p144 = scmp.eq.s32.totalorder %s26, 1
      %p145 = por %p143, %p144
      %p146 = scmp.ne.s32.totalorder %s137, %s138
      %p147 = scmp.eq.s32.totalorder %s26, 0
      %p148 = por %p146, %p147
      %p149 = scmp.ne.s32.totalorder %s137, %s138
      %p150 = scmp.eq.s32.totalorder %s27, 1
      %p151 = por %p149, %p150
      %p153 = scmp.ne.s32.totalorder %s138, %s152
      %p154 = scmp.eq.s32.totalorder %s27, 0
      %p155 = por %p153, %p154
      %s157 = sadd.s32 %s156, 1
      %p160 = scmp.eq.s32.totalorder %s21, 1
      %p161 = scmp.ne.s32.totalorder %s156, %s158
      %p162 = scmp.eq.s32.totalorder %s21, 0
      %p163 = por %p161, %p162
      %p164 = scmp.ne.s32.totalorder %s156, %s158
      %p165 = scmp.eq.s32.totalorder %s26, 1
      %p166 = por %p164, %p165
      %p167 = scmp.ne.s32.totalorder %s158, %s159
      %p168 = scmp.eq.s32.totalorder %s26, 0
      %p169 = por %p167, %p168
      %p170 = scmp.ne.s32.totalorder %s158, %s159
      %p171 = scmp.eq.s32.totalorder %s27, 1
      %p172 = por %p170, %p171
      %p174 = scmp.ne.s32.totalorder %s159, %s173
      %p175 = scmp.eq.s32.totalorder %s27, 0
      %p176 = por %p174, %p175
      %s178 = sadd.s32 %s177, 1
      %p181 = scmp.eq.s32.totalorder %s21, 1
      %p182 = scmp.ne.s32.totalorder %s177, %s179
      %p183 = scmp.eq.s32.totalorder %s21, 0
      %p184 = por %p182, %p183
      %p185 = scmp.ne.s32.totalorder %s177, %s179
      %p186 = scmp.eq.s32.totalorder %s26, 1
      %p187 = por %p185, %p186
      %p188 = scmp.ne.s32.totalorder %s179, %s180
      %p189 = scmp.eq.s32.totalorder %s26, 0
      %p190 = por %p188, %p189
      %p191 = scmp.ne.s32.totalorder %s179, %s180
      %p192 = scmp.eq.s32.totalorder %s27, 1
      %p193 = por %p191, %p192
      %p195 = scmp.ne.s32.totalorder %s180, %s194
      %p196 = scmp.eq.s32.totalorder %s27, 0
      %p197 = por %p195, %p196
      %s198 = ssub.s32 %s28, %s40
      %s199 = ssub.s32 %s29, %s36
      %s200 = sor.u32 %s198, %s199
      %p201 = scmp.eq.s32.totalorder %s200, 0
      %s203 = sadd.s32 %s202, 1
      %s204 = scalar_select %p201, %s202, %s203
      %p207 = pneg %p201
      %p208 = scmp.eq.s32.totalorder %s21, 1
      %p209 = por %p207, %p208
      %p210 = scmp.ne.s32.totalorder %s202, %s205
      %p211 = scmp.eq.s32.totalorder %s21, 0
      %p212 = por %p210, %p211
      %p213 = scmp.ne.s32.totalorder %s202, %s205
      %p214 = scmp.eq.s32.totalorder %s26, 1
      %p215 = por %p213, %p214
      %p216 = scmp.ne.s32.totalorder %s205, %s206
      %p217 = scmp.eq.s32.totalorder %s26, 0
      %p218 = por %p216, %p217
      %p219 = scmp.ne.s32.totalorder %s205, %s206
      %p220 = scmp.eq.s32.totalorder %s27, 1
      %p221 = por %p219, %p220
      %p223 = scmp.ne.s32.totalorder %s206, %s222
      %p224 = scmp.eq.s32.totalorder %s27, 0
      %p225 = por %p223, %p224
      %p226 = scmp.le.s32.totalorder 1, %s21
      %p227 = scmp.lt.s32.totalorder %s21, 3
      %p228 = pnand %p226, %p227
      %p229 = pneg %p228
      // Predicated region
      $region9: #{tpu_custom_call.1} parent=5 // pred_check
        _
      $region10: #{tpu_custom_call.1} parent=5 // pred_check_branch
        %231 = sbr.rel (%p228) target = $region12
      $region11: #{tpu_custom_call.1} parent=5 // pred_region
        %s232 = ssub.s32 %s21, 1
        // Predicated region
        $region13: #{tpu_custom_call.1} parent=11 // pred_check
          %p233 = pneg %p106
        $region14: #{tpu_custom_call.1} parent=11 // pred_check_branch
          %235 = sbr.rel (%p233) target = $region16
        $region15: #{tpu_custom_call.1} parent=11 // pred_region
          %s237 = ssub.s32 256, 256
          %238 = vsyncadd [#allocation8], %s237
          %s239 = sshll.u32 [#allocation7], 4
          %s240 = int_to_ptr.vmem [resolvable:$true] %s239
          %245 = dma.hbm_to_vmem [thread:$0]  %s2, 256, %s240, [#allocation8], 64, 64, 4
        $region16: #{tpu_custom_call.1} parent=11 // pred_fallthru
          _
        // Predicated region
        $region17: #{tpu_custom_call.1} parent=11 // pred_check
          %p246 = pneg %p127
        $region18: #{tpu_custom_call.1} parent=11 // pred_check_branch
          %248 = sbr.rel (%p246) target = $region20
        $region19: #{tpu_custom_call.1} parent=11 // pred_region
          %s250 = ssub.s32 256, 256
          %251 = vsyncadd [#allocation8], %s250
          %s252 = sshll.u32 [#allocation9], 4
          %s253 = int_to_ptr.vmem [resolvable:$true] %s252
          %258 = dma.hbm_to_vmem [thread:$0]  %s3, 256, %s253, [#allocation8], 64, 64, 4
        $region20: #{tpu_custom_call.1} parent=11 // pred_fallthru
          _
        // Predicated region
        $region21: #{tpu_custom_call.1} parent=11 // pred_check
          %p259 = pneg %p148
        $region22: #{tpu_custom_call.1} parent=11 // pred_check_branch
          %261 = sbr.rel (%p259) target = $region24
        $region23: #{tpu_custom_call.1} parent=11 // pred_region
          %s263 = ssub.s32 256, 256
          %264 = vsyncadd [#allocation11], %s263
          %s265 = sshll.u32 [#allocation10], 4
          %s266 = int_to_ptr.vmem [resolvable:$true] %s265
          %271 = dma.hbm_to_vmem [thread:$0]  %s4, 256, %s266, [#allocation11], 64, 64, 4
        $region24: #{tpu_custom_call.1} parent=11 // pred_fallthru
          _
        // Predicated region
        $region25: #{tpu_custom_call.1} parent=11 // pred_check
          %p272 = pneg %p169
        $region26: #{tpu_custom_call.1} parent=11 // pred_check_branch
          %274 = sbr.rel (%p272) target = $region28
        $region27: #{tpu_custom_call.1} parent=11 // pred_region
          _
        $region28: #{tpu_custom_call.1} parent=11 // pred_fallthru
          _
        // Predicated region
        $region29: #{tpu_custom_call.1} parent=11 // pred_check
          %p275 = pneg %p190
        $region30: #{tpu_custom_call.1} parent=11 // pred_check_branch
          %277 = sbr.rel (%p275) target = $region32
        $region31: #{tpu_custom_call.1} parent=11 // pred_region
          _
        $region32: #{tpu_custom_call.1} parent=11 // pred_fallthru
          _
      $region12: #{tpu_custom_call.1} parent=5 // pred_fallthru
        _
      %p278 = scmp.lt.s32.totalorder %s21, 2
      // Predicated region
      $region33: #{tpu_custom_call.1} parent=5 // pred_check
        %p279 = pneg %p278
      $region34: #{tpu_custom_call.1} parent=5 // pred_check_branch
        %281 = sbr.rel (%p279) target = $region36
      $region35: #{tpu_custom_call.1} parent=5 // pred_region
        // Predicated region
        $region37: #{tpu_custom_call.1} parent=35 // pred_check
          %p282 = pneg %p53
        $region38: #{tpu_custom_call.1} parent=35 // pred_check_branch
          %284 = sbr.rel (%p282) target = $region40
        $region39: #{tpu_custom_call.1} parent=35 // pred_region
          %s285 = sand.u32 %s43, 1
          %s286 = scalar_lea.sflag [#allocation5], %s285
          %s287 = sand.u32 %s43, 1
          %s288 = smul.addr %s287, 4
          %s289 = scalar_lea.vmem [#allocation4], %s288
          %s291 = ssub.s32 64, 64
          %292 = vsyncadd %s286, %s291
          %s293 = smul.addr %s28, 64
          %s294 = scalar_lea.hbm %s0, %s293
          %s296 = sshll.u32 %s289, 4
          %s297 = int_to_ptr.vmem [resolvable:$true] %s296
          %299 = dma.hbm_to_vmem [thread:$0]  %s294, 64, %s297, %s286
        $region40: #{tpu_custom_call.1} parent=35 // pred_fallthru
          _
        // Predicated region
        $region41: #{tpu_custom_call.1} parent=35 // pred_check
          %p300 = pneg %p79
        $region42: #{tpu_custom_call.1} parent=35 // pred_check_branch
          %302 = sbr.rel (%p300) target = $region44
        $region43: #{tpu_custom_call.1} parent=35 // pred_region
          %p303 = scmp.lt.s32.totalorder %s28, 1
          %s304 = scalar_select %p303, %s28, 1
          %s305 = scalar_lea.vmem %s1, %s304
        $region44: #{tpu_custom_call.1} parent=35 // pred_fallthru
          _
      $region36: #{tpu_custom_call.1} parent=5 // pred_fallthru
        _
      %p306 = scmp.le.s32.totalorder 1, %s21
      %p307 = scmp.lt.s32.totalorder %s21, 3
      %p308 = pnand %p306, %p307
      %p309 = pneg %p308
      // Predicated region
      $region45: #{tpu_custom_call.1} parent=5 // pred_check
        _
      $region46: #{tpu_custom_call.1} parent=5 // pred_check_branch
        %311 = sbr.rel (%p308) target = $region48
      $region47: #{tpu_custom_call.1} parent=5 // pred_region
        %s312 = ssub.s32 %s21, 1
        %s313 = sand.u32 %s46, 1
        %s314 = scalar_lea.sflag [#allocation5], %s313
        %s315 = sand.u32 %s46, 1
        %s316 = smul.addr %s315, 4
        %s317 = scalar_lea.vmem [#allocation4], %s316
        // Predicated region
        $region49: #{tpu_custom_call.1} parent=47 // pred_check
          %p318 = pneg %p59
        $region50: #{tpu_custom_call.1} parent=47 // pred_check_branch
          %320 = sbr.rel (%p318) target = $region52
        $region51: #{tpu_custom_call.1} parent=47 // pred_region
          %321 = dma.done %s314, 64
        $region52: #{tpu_custom_call.1} parent=47 // pred_fallthru
          _
        // Predicated region
        $region53: #{tpu_custom_call.1} parent=47 // pred_check
          %p322 = pneg %p106
        $region54: #{tpu_custom_call.1} parent=47 // pred_check_branch
          %324 = sbr.rel (%p322) target = $region56
        $region55: #{tpu_custom_call.1} parent=47 // pred_region
          %325 = dma.done [#allocation8], 256
        $region56: #{tpu_custom_call.1} parent=47 // pred_fallthru
          _
        // Predicated region
        $region57: #{tpu_custom_call.1} parent=47 // pred_check
          %p326 = pneg %p127
        $region58: #{tpu_custom_call.1} parent=47 // pred_check_branch
          %328 = sbr.rel (%p326) target = $region60
        $region59: #{tpu_custom_call.1} parent=47 // pred_region
          %329 = dma.done [#allocation8], 256
        $region60: #{tpu_custom_call.1} parent=47 // pred_fallthru
          _
        // Predicated region
        $region61: #{tpu_custom_call.1} parent=47 // pred_check
          %p330 = pneg %p148
        $region62: #{tpu_custom_call.1} parent=47 // pred_check_branch
          %332 = sbr.rel (%p330) target = $region64
        $region63: #{tpu_custom_call.1} parent=47 // pred_region
          %333 = dma.done [#allocation11], 256
        $region64: #{tpu_custom_call.1} parent=47 // pred_fallthru
          _
        %s334 = sand.u32 %s46, 1
        %s335 = scalar_lea.sflag [#allocation5], %s334
        %s336 = sand.u32 %s46, 1
        %s337 = smul.addr %s336, 4
        %s338 = scalar_lea.vmem [#allocation4], %s337
        %p339 = pneg %p59
        %p340 = pneg %p56
        %p341 = scmp.lt.s32.totalorder %s30, 1
        %s342 = scalar_select %p341, %s30, 1
        %s343 = scalar_lea.vmem %s1, %s342
        %p344 = pneg %p85
        %p345 = pneg %p82
        %p346 = pneg %p106
        %p347 = pneg %p103
        %p348 = pneg %p127
        %p349 = pneg %p124
        %p350 = pneg %p148
        %p351 = pneg %p145
        %p352 = pneg %p169
        %p353 = pneg %p166
        %p354 = pneg %p190
        %p355 = pneg %p187
        %p356 = pneg %p218
        %p357 = pneg %p215
        %s358 = sand.u32 %s205, 1
        %s359 = scalar_lea.sflag [#allocation6], %s358
        %s360 = sand.u32 %s205, 1
        %s361 = smul.addr %s360, 8
        %s362 = scalar_lea.vmem [#allocation12], %s361
        %p363 = scmp.lt.s32.totalorder %s30, 1
        %s364 = scalar_select %p363, %s30, 1
        %s365 = scalar_lea.vmem %s1, %s364
        %p367 = scmp.eq.s32.totalorder %s31, 0
        // Predicated region
        $region65: #{tpu_custom_call.1} parent=47 // pred_check
          %p368 = pneg %p367
        $region66: #{tpu_custom_call.1} parent=47 // pred_check_branch
          %370 = sbr.rel (%p368) target = $region68
        $region67: #{tpu_custom_call.1} parent=47 // pred_region
          %v371 = vld [vmem:[%s317] sm:$0xf]
          %v372 = vld [vmem:[#allocation9] sm:$0xf]
          %v373 = vld [vmem:[#allocation9 + $0x4] sm:$0xf]
          %v374 = vld [vmem:[#allocation9 + $0x8] sm:$0xf]
          %v375 = vld [vmem:[#allocation9 + $0xc] sm:$0xf]
          %v380 = vunpack.c.l.b16 %v372
          %v381 = vunpack.c.l.b16 %v373
          %v382 = vunpack.c.l.b16 %v374
          %v383 = vunpack.c.l.b16 %v375
          %v384 = vpack.c.b16 %v381, %v380
          %v385 = vpack.c.b16 %v383, %v382
          %vm388 = vcmask 261120
          %v390 = vsel %vm388, %v371, 0
          %392 = vmatprep.subr.bf16.mxu0 0
          %393 = vmatpush1.bf16.msra.mxu0 %v384
          %394 = vmatprep.subr.bf16.mxu0 0
          %395 = vmatpush1.bf16.msra.mxu0 %v385
          %396 = vmatprep.subr.bf16.mxu0 0
          %397 = vmatpush1.bf16.msra.mxu0 0
          %398 = vmatprep.subr.bf16.mxu0 0
          %399 = vmatpush1.bf16.msra.mxu0 0
          %400 = vmatprep.subr.bf16.mxu0 0
          %401 = vmatpush1.bf16.msra.mxu0 0
          %402 = vmatprep.subr.bf16.mxu0 0
          %403 = vmatpush1.bf16.msra.mxu0 0
          %404 = vmatprep.subr.bf16.mxu0 0
          %405 = vmatpush1.bf16.msra.mxu0 0
          %406 = vmatprep.subr.bf16.mxu0 0
          %407 = vmatpush1.bf16.msra.mxu0 0
          %408 = vmatprep.subr.bf16.mxu0 0
          %409 = vmatpush1.bf16.msra.mxu0 0
          %410 = vmatprep.subr.bf16.mxu0 0
          %411 = vmatpush1.bf16.msra.mxu0 0
          %412 = vmatprep.subr.bf16.mxu0 0
          %413 = vmatpush1.bf16.msra.mxu0 0
          %414 = vmatprep.subr.bf16.mxu0 0
          %415 = vmatpush1.bf16.msra.mxu0 0
          %416 = vmatprep.subr.bf16.mxu0 0
          %417 = vmatpush1.bf16.msra.mxu0 0
          %418 = vmatprep.subr.bf16.mxu0 0
          %419 = vmatpush1.bf16.msra.mxu0 0
          %420 = vmatprep.subr.bf16.mxu0 0
          %421 = vmatpush1.bf16.msra.mxu0 0
          %422 = vmatprep.subr.bf16.mxu0 0
          %423 = vmatpush1.bf16.msra.mxu0 0
          %424 = vmatprep.mubr.bf16.mxu0 0
          %425 = vmatmul.mubr.bf16.gmra.mrb[0].mxu0 %v390
          %v426 = vpop.f32.mrb[0].mxu0
          %v427 = vadd.f32 0.0, %v426
          %v428 = vpop.f32.mrb[0].mxu0
          %v429 = vpop.f32.mrb[0].mxu0
          %v430 = vpop.f32.mrb[0].mxu0
          %431 = vdwg.mxu0
          %v432 = vpack.c.bf16 %v427, %v427
          %vm433 = vcmask 519168
          %434 = vst.msk [vmem:[#allocation2] sm:$0xf] %vm433, %v432
        $region68: #{tpu_custom_call.1} parent=47 // pred_fallthru
          _
        %s435 = smul.u32 %s31, 8
        %s436 = sshra.s32 %s435, 3
        %s437 = sand.u32 %s435, 7
        %s438 = smul.addr %s436, 4
        %s439 = scalar_lea.vmem %s317, %s438 [#allocation4]
        %v440 = vld [vmem:[%s439] sm:$0xf]
        %v441 = vld [vmem:[#allocation7] sm:$0xf]
        %v442 = vld [vmem:[#allocation7 + $0x4] sm:$0xf]
        %v443 = vld [vmem:[#allocation7 + $0x8] sm:$0xf]
        %v444 = vld [vmem:[#allocation7 + $0xc] sm:$0xf]
        %v449 = vunpack.c.l.b16 %v441
        %v450 = vunpack.c.l.b16 %v442
        %v451 = vunpack.c.l.b16 %v443
        %v452 = vunpack.c.l.b16 %v444
        %v453 = vpack.c.b16 %v450, %v449
        %v454 = vpack.c.b16 %v452, %v451
        %vm457 = vcmask 261120
        %v459 = vsel %vm457, %v440, 0
        %461 = vmatprep.subr.bf16.mxu0 0
        %462 = vmatpush1.bf16.msra.mxu0 %v453
        %463 = vmatprep.subr.bf16.mxu0 0
        %464 = vmatpush1.bf16.msra.mxu0 %v454
        %465 = vmatprep.subr.bf16.mxu0 0
        %466 = vmatpush1.bf16.msra.mxu0 0
        %467 = vmatprep.subr.bf16.mxu0 0
        %468 = vmatpush1.bf16.msra.mxu0 0
        %469 = vmatprep.subr.bf16.mxu0 0
        %470 = vmatpush1.bf16.msra.mxu0 0
        %471 = vmatprep.subr.bf16.mxu0 0
        %472 = vmatpush1.bf16.msra.mxu0 0
        %473 = vmatprep.subr.bf16.mxu0 0
        %474 = vmatpush1.bf16.msra.mxu0 0
        %475 = vmatprep.subr.bf16.mxu0 0
        %476 = vmatpush1.bf16.msra.mxu0 0
        %477 = vmatprep.subr.bf16.mxu0 0
        %478 = vmatpush1.bf16.msra.mxu0 0
        %479 = vmatprep.subr.bf16.mxu0 0
        %480 = vmatpush1.bf16.msra.mxu0 0
        %481 = vmatprep.subr.bf16.mxu0 0
        %482 = vmatpush1.bf16.msra.mxu0 0
        %483 = vmatprep.subr.bf16.mxu0 0
        %484 = vmatpush1.bf16.msra.mxu0 0
        %485 = vmatprep.subr.bf16.mxu0 0
        %486 = vmatpush1.bf16.msra.mxu0 0
        %487 = vmatprep.subr.bf16.mxu0 0
        %488 = vmatpush1.bf16.msra.mxu0 0
        %489 = vmatprep.subr.bf16.mxu0 0
        %490 = vmatpush1.bf16.msra.mxu0 0
        %491 = vmatprep.subr.bf16.mxu0 0
        %492 = vmatpush1.bf16.msra.mxu0 0
        %493 = vmatprep.mubr.bf16.mxu0 0
        %494 = vmatmul.mubr.bf16.gmra.mrb[0].mxu0 %v459
        %v495 = vpop.f32.mrb[0].mxu0
        %v496 = vadd.f32 0.0, %v495
        %v497 = vpop.f32.mrb[0].mxu0
        %v498 = vpop.f32.mrb[0].mxu0
        %v499 = vpop.f32.mrb[0].mxu0
        %500 = vdwg.mxu0
        %v501 = vpack.c.bf16 %v496, %v496
        %v502 = vld [vmem:[%s365] sm:$0x1]
        %v503 = vld [vmem:[#allocation2] sm:$0xf]
        %v505 = vlaneseq
        %v506 = vshrl.u32 %v505, 7
        %v507 = vsub.s32 0, %v506
        %v508 = vrot.slane %v502, %v507
        %vm510 = vcmask 64512
        %v512 = vsel %vm510, %v501, 0
        %v515 = vsel %vm510, %v503, 0
        %517 = vmatprep.subr.bf16.mxu0 0
        %518 = vmatpush1.bf16.xpose.msra.mxu0 %v515
        %519 = vmatprep.subr.bf16.mxu0 0
        %520 = vmatpush1.bf16.xpose.msra.mxu0 0
        %521 = vmatprep.subr.bf16.mxu0 0
        %522 = vmatpush1.bf16.xpose.msra.mxu0 0
        %523 = vmatprep.subr.bf16.mxu0 0
        %524 = vmatpush1.bf16.xpose.msra.mxu0 0
        %525 = vmatprep.subr.bf16.mxu0 0
        %526 = vmatpush1.bf16.xpose.msra.mxu0 0
        %527 = vmatprep.subr.bf16.mxu0 0
        %528 = vmatpush1.bf16.xpose.msra.mxu0 0
        %529 = vmatprep.subr.bf16.mxu0 0
        %530 = vmatpush1.bf16.xpose.msra.mxu0 0
        %531 = vmatprep.subr.bf16.mxu0 0
        %532 = vmatpush1.bf16.xpose.msra.mxu0 0
        %533 = vmatprep.subr.bf16.mxu0 0
        %534 = vmatpush1.bf16.xpose.msra.mxu0 0
        %535 = vmatprep.subr.bf16.mxu0 0
        %536 = vmatpush1.bf16.xpose.msra.mxu0 0
        %537 = vmatprep.subr.bf16.mxu0 0
        %538 = vmatpush1.bf16.xpose.msra.mxu0 0
        %539 = vmatprep.subr.bf16.mxu0 0
        %540 = vmatpush1.bf16.xpose.msra.mxu0 0
        %541 = vmatprep.subr.bf16.mxu0 0
        %542 = vmatpush1.bf16.xpose.msra.mxu0 0
        %543 = vmatprep.subr.bf16.mxu0 0
        %544 = vmatpush1.bf16.xpose.msra.mxu0 0
        %545 = vmatprep.subr.bf16.mxu0 0
        %546 = vmatpush1.bf16.xpose.msra.mxu0 0
        %547 = vmatprep.subr.bf16.mxu0 0
        %548 = vmatpush1.bf16.xpose.msra.mxu0 0
        %549 = vmatprep.mubr.bf16.mxu0 0
        %550 = vmatmul.mubr.bf16.gmra.mrb[0].mxu0 %v512
        %v551 = vpop.f32.mrb[0].mxu0
        %v552 = vadd.f32 %v508, %v551
        %v553 = vpop.f32.mrb[0].mxu0
        %v554 = vpop.f32.mrb[0].mxu0
        %v555 = vpop.f32.mrb[0].mxu0
        %556 = vdwg.mxu0
        %v557 = vsel %vm510, %v552, -inf
        %558 = vmax.xlane.f32.xlu0 %v557
        %v559 = vpop.xlane.xlu0 %558
        %v560 = vsub.f32 %v552, %v559
        %v561 = vmul.f32 %v560, 1.442695
        %v562 = vpow.pop %v561
        %v563 = vsel %vm510, %v562, 0.0
        %564 = vadd.xlane.f32.xlu0 %v563
        %v565 = vpop.xlane.xlu0 %564
        %v566 = vpack.c.bf16 %v562, %v562
        %v568 = vunpack.c.l.b16 %v503
        %v569 = vpack.c.b16 %v568, %v568
        %570 = vrot.lane.b32.xlu0 %v569, 96
        %v571 = vpop.permute.xlu0 %570
        %v573 = vsel %vm510, %v566, 0
        %vm575 = vcmask 1043456
        %v577 = vsel %vm575, %v571, 0
        %579 = vmatprep.subr.bf16.mxu0 0
        %580 = vmatpush1.bf16.msra.mxu0 %v577
        %581 = vmatprep.subr.bf16.mxu0 0
        %582 = vmatpush1.bf16.msra.mxu0 0
        %583 = vmatprep.subr.bf16.mxu0 0
        %584 = vmatpush1.bf16.msra.mxu0 0
        %585 = vmatprep.subr.bf16.mxu0 0
        %586 = vmatpush1.bf16.msra.mxu0 0
        %587 = vmatprep.subr.bf16.mxu0 0
        %588 = vmatpush1.bf16.msra.mxu0 0
        %589 = vmatprep.subr.bf16.mxu0 0
        %590 = vmatpush1.bf16.msra.mxu0 0
        %591 = vmatprep.subr.bf16.mxu0 0
        %592 = vmatpush1.bf16.msra.mxu0 0
        %593 = vmatprep.subr.bf16.mxu0 0
        %594 = vmatpush1.bf16.msra.mxu0 0
        %595 = vmatprep.subr.bf16.mxu0 0
        %596 = vmatpush1.bf16.msra.mxu0 0
        %597 = vmatprep.subr.bf16.mxu0 0
        %598 = vmatpush1.bf16.msra.mxu0 0
        %599 = vmatprep.subr.bf16.mxu0 0
        %600 = vmatpush1.bf16.msra.mxu0 0
        %601 = vmatprep.subr.bf16.mxu0 0
        %602 = vmatpush1.bf16.msra.mxu0 0
        %603 = vmatprep.subr.bf16.mxu0 0
        %604 = vmatpush1.bf16.msra.mxu0 0
        %605 = vmatprep.subr.bf16.mxu0 0
        %606 = vmatpush1.bf16.msra.mxu0 0
        %607 = vmatprep.subr.bf16.mxu0 0
        %608 = vmatpush1.bf16.msra.mxu0 0
        %609 = vmatprep.subr.bf16.mxu0 0
        %610 = vmatpush1.bf16.msra.mxu0 0
        %611 = vmatprep.mubr.bf16.mxu0 0
        %612 = vmatmul.mubr.bf16.gmra.mrb[0].mxu0 %v573
        %v613 = vpop.f32.mrb[0].mxu0
        %v614 = vadd.f32 0.0, %v613
        %v615 = vpop.f32.mrb[0].mxu0
        %v616 = vpop.f32.mrb[0].mxu0
        %v617 = vpop.f32.mrb[0].mxu0
        %618 = vdwg.mxu0
        %v619 = vrcp.pop %v565
        %v620 = vmul.f32 %v614, %v619
        %v621 = vpack.c.bf16 %v620, %v620
        %vm622 = vcmask 60416
        %623 = vst.msk [vmem:[#allocation3] sm:$0xf] %vm622, %v621
        %v624 = vld [vmem:[#allocation2] sm:$0xf]
        %626 = vrot.lane.b32.xlu0 %v501, 120
        %v627 = vpop.permute.xlu0 %626
        %v629 = vunpack.c.l.b16 %v624
        %v630 = vpack.c.b16 %v629, %v629
        %631 = vrot.lane.b32.xlu0 %v630, 120
        %v632 = vpop.permute.xlu0 %631
        %v634 = vsel %vm510, %v627, 0
        %v637 = vsel %vm510, %v632, 0
        %639 = vmatprep.subr.bf16.mxu0 0
        %640 = vmatpush1.bf16.xpose.msra.mxu0 %v637
        %641 = vmatprep.subr.bf16.mxu0 0
        %642 = vmatpush1.bf16.xpose.msra.mxu0 0
        %643 = vmatprep.subr.bf16.mxu0 0
        %644 = vmatpush1.bf16.xpose.msra.mxu0 0
        %645 = vmatprep.subr.bf16.mxu0 0
        %646 = vmatpush1.bf16.xpose.msra.mxu0 0
        %647 = vmatprep.subr.bf16.mxu0 0
        %648 = vmatpush1.bf16.xpose.msra.mxu0 0
        %649 = vmatprep.subr.bf16.mxu0 0
        %650 = vmatpush1.bf16.xpose.msra.mxu0 0
        %651 = vmatprep.subr.bf16.mxu0 0
        %652 = vmatpush1.bf16.xpose.msra.mxu0 0
        %653 = vmatprep.subr.bf16.mxu0 0
        %654 = vmatpush1.bf16.xpose.msra.mxu0 0
        %655 = vmatprep.subr.bf16.mxu0 0
        %656 = vmatpush1.bf16.xpose.msra.mxu0 0
        %657 = vmatprep.subr.bf16.mxu0 0
        %658 = vmatpush1.bf16.xpose.msra.mxu0 0
        %659 = vmatprep.subr.bf16.mxu0 0
        %660 = vmatpush1.bf16.xpose.msra.mxu0 0
        %661 = vmatprep.subr.bf16.mxu0 0
        %662 = vmatpush1.bf16.xpose.msra.mxu0 0
        %663 = vmatprep.subr.bf16.mxu0 0
        %664 = vmatpush1.bf16.xpose.msra.mxu0 0
        %665 = vmatprep.subr.bf16.mxu0 0
        %666 = vmatpush1.bf16.xpose.msra.mxu0 0
        %667 = vmatprep.subr.bf16.mxu0 0
        %668 = vmatpush1.bf16.xpose.msra.mxu0 0
        %669 = vmatprep.subr.bf16.mxu0 0
        %670 = vmatpush1.bf16.xpose.msra.mxu0 0
        %671 = vmatprep.mubr.bf16.mxu0 0
        %672 = vmatmul.mubr.bf16.gmra.mrb[0].mxu0 %v634
        %v673 = vpop.f32.mrb[0].mxu0
        %v674 = vadd.f32 %v508, %v673
        %v675 = vpop.f32.mrb[0].mxu0
        %v676 = vpop.f32.mrb[0].mxu0
        %v677 = vpop.f32.mrb[0].mxu0
        %678 = vdwg.mxu0
        %v679 = vsel %vm510, %v674, -inf
        %680 = vmax.xlane.f32.xlu0 %v679
        %v681 = vpop.xlane.xlu0 %680
        %v682 = vsub.f32 %v674, %v681
        %v683 = vmul.f32 %v682, 1.442695
        %v684 = vpow.pop %v683
        %v685 = vsel %vm510, %v684, 0.0
        %686 = vadd.xlane.f32.xlu0 %v685
        %v687 = vpop.xlane.xlu0 %686
        %v688 = vpack.c.bf16 %v684, %v684
        %689 = vrot.lane.b32.xlu0 %v630, 88
        %v690 = vpop.permute.xlu0 %689
        %v692 = vsel %vm510, %v688, 0
        %v695 = vsel %vm575, %v690, 0
        %697 = vmatprep.subr.bf16.mxu0 0
        %698 = vmatpush1.bf16.msra.mxu0 %v695
        %699 = vmatprep.subr.bf16.mxu0 0
        %700 = vmatpush1.bf16.msra.mxu0 0
        %701 = vmatprep.subr.bf16.mxu0 0
        %702 = vmatpush1.bf16.msra.mxu0 0
        %703 = vmatprep.subr.bf16.mxu0 0
        %704 = vmatpush1.bf16.msra.mxu0 0
        %705 = vmatprep.subr.bf16.mxu0 0
        %706 = vmatpush1.bf16.msra.mxu0 0
        %707 = vmatprep.subr.bf16.mxu0 0
        %708 = vmatpush1.bf16.msra.mxu0 0
        %709 = vmatprep.subr.bf16.mxu0 0
        %710 = vmatpush1.bf16.msra.mxu0 0
        %711 = vmatprep.subr.bf16.mxu0 0
        %712 = vmatpush1.bf16.msra.mxu0 0
        %713 = vmatprep.subr.bf16.mxu0 0
        %714 = vmatpush1.bf16.msra.mxu0 0
        %715 = vmatprep.subr.bf16.mxu0 0
        %716 = vmatpush1.bf16.msra.mxu0 0
        %717 = vmatprep.subr.bf16.mxu0 0
        %718 = vmatpush1.bf16.msra.mxu0 0
        %719 = vmatprep.subr.bf16.mxu0 0
        %720 = vmatpush1.bf16.msra.mxu0 0
        %721 = vmatprep.subr.bf16.mxu0 0
        %722 = vmatpush1.bf16.msra.mxu0 0
        %723 = vmatprep.subr.bf16.mxu0 0
        %724 = vmatpush1.bf16.msra.mxu0 0
        %725 = vmatprep.subr.bf16.mxu0 0
        %726 = vmatpush1.bf16.msra.mxu0 0
        %727 = vmatprep.subr.bf16.mxu0 0
        %728 = vmatpush1.bf16.msra.mxu0 0
        %729 = vmatprep.mubr.bf16.mxu0 0
        %730 = vmatmul.mubr.bf16.gmra.mrb[0].mxu0 %v692
        %v731 = vpop.f32.mrb[0].mxu0
        %v732 = vadd.f32 0.0, %v731
        %v733 = vpop.f32.mrb[0].mxu0
        %v734 = vpop.f32.mrb[0].mxu0
        %v735 = vpop.f32.mrb[0].mxu0
        %736 = vdwg.mxu0
        %v737 = vrcp.pop %v687
        %v738 = vmul.f32 %v732, %v737
        %v739 = vpack.c.bf16 %v738, %v738
        %v741 = vunpack.c.l.b16 %v739
        %v742 = vpack.c.b16 %v741, %v741
        %743 = vrot.lane.b32.xlu0 %v742, 8
        %v744 = vpop.permute.xlu0 %743
        %vm746 = vcmask 126016
        %747 = vst.msk [vmem:[#allocation3] sm:$0xf] %vm746, %v744
        %v748 = vld [vmem:[#allocation2] sm:$0xf]
        %749 = vrot.lane.b32.xlu0 %v501, 112
        %v750 = vpop.permute.xlu0 %749
        %v752 = vunpack.c.l.b16 %v748
        %v753 = vpack.c.b16 %v752, %v752
        %754 = vrot.lane.b32.xlu0 %v753, 112
        %v755 = vpop.permute.xlu0 %754
        %v757 = vsel %vm510, %v750, 0
        %v760 = vsel %vm510, %v755, 0
        %762 = vmatprep.subr.bf16.mxu0 0
        %763 = vmatpush1.bf16.xpose.msra.mxu0 %v760
        %764 = vmatprep.subr.bf16.mxu0 0
        %765 = vmatpush1.bf16.xpose.msra.mxu0 0
        %766 = vmatprep.subr.bf16.mxu0 0
        %767 = vmatpush1.bf16.xpose.msra.mxu0 0
        %768 = vmatprep.subr.bf16.mxu0 0
        %769 = vmatpush1.bf16.xpose.msra.mxu0 0
        %770 = vmatprep.subr.bf16.mxu0 0
        %771 = vmatpush1.bf16.xpose.msra.mxu0 0
        %772 = vmatprep.subr.bf16.mxu0 0
        %773 = vmatpush1.bf16.xpose.msra.mxu0 0
        %774 = vmatprep.subr.bf16.mxu0 0
        %775 = vmatpush1.bf16.xpose.msra.mxu0 0
        %776 = vmatprep.subr.bf16.mxu0 0
        %777 = vmatpush1.bf16.xpose.msra.mxu0 0
        %778 = vmatprep.subr.bf16.mxu0 0
        %779 = vmatpush1.bf16.xpose.msra.mxu0 0
        %780 = vmatprep.subr.bf16.mxu0 0
        %781 = vmatpush1.bf16.xpose.msra.mxu0 0
        %782 = vmatprep.subr.bf16.mxu0 0
        %783 = vmatpush1.bf16.xpose.msra.mxu0 0
        %784 = vmatprep.subr.bf16.mxu0 0
        %785 = vmatpush1.bf16.xpose.msra.mxu0 0
        %786 = vmatprep.subr.bf16.mxu0 0
        %787 = vmatpush1.bf16.xpose.msra.mxu0 0
        %788 = vmatprep.subr.bf16.mxu0 0
        %789 = vmatpush1.bf16.xpose.msra.mxu0 0
        %790 = vmatprep.subr.bf16.mxu0 0
        %791 = vmatpush1.bf16.xpose.msra.mxu0 0
        %792 = vmatprep.subr.bf16.mxu0 0
        %793 = vmatpush1.bf16.xpose.msra.mxu0 0
        %794 = vmatprep.mubr.bf16.mxu0 0
        %795 = vmatmul.mubr.bf16.gmra.mrb[0].mxu0 %v757
        %v796 = vpop.f32.mrb[0].mxu0
        %v797 = vadd.f32 %v508, %v796
        %v798 = vpop.f32.mrb[0].mxu0
        %v799 = vpop.f32.mrb[0].mxu0
        %v800 = vpop.f32.mrb[0].mxu0
        %801 = vdwg.mxu0
        %v802 = vsel %vm510, %v797, -inf
        %803 = vmax.xlane.f32.xlu0 %v802
        %v804 = vpop.xlane.xlu0 %803
        %v805 = vsub.f32 %v797, %v804
        %v806 = vmul.f32 %v805, 1.442695
        %v807 = vpow.pop %v806
        %v808 = vsel %vm510, %v807, 0.0
        %809 = vadd.xlane.f32.xlu0 %v808
        %v810 = vpop.xlane.xlu0 %809
        %v811 = vpack.c.bf16 %v807, %v807
        %812 = vrot.lane.b32.xlu0 %v753, 80
        %v813 = vpop.permute.xlu0 %812
        %v815 = vsel %vm510, %v811, 0
        %v818 = vsel %vm575, %v813, 0
        %820 = vmatprep.subr.bf16.mxu0 0
        %821 = vmatpush1.bf16.msra.mxu0 %v818
        %822 = vmatprep.subr.bf16.mxu0 0
        %823 = vmatpush1.bf16.msra.mxu0 0
        %824 = vmatprep.subr.bf16.mxu0 0
        %825 = vmatpush1.bf16.msra.mxu0 0
        %826 = vmatprep.subr.bf16.mxu0 0
        %827 = vmatpush1.bf16.msra.mxu0 0
        %828 = vmatprep.subr.bf16.mxu0 0
        %829 = vmatpush1.bf16.msra.mxu0 0
        %830 = vmatprep.subr.bf16.mxu0 0
        %831 = vmatpush1.bf16.msra.mxu0 0
        %832 = vmatprep.subr.bf16.mxu0 0
        %833 = vmatpush1.bf16.msra.mxu0 0
        %834 = vmatprep.subr.bf16.mxu0 0
        %835 = vmatpush1.bf16.msra.mxu0 0
        %836 = vmatprep.subr.bf16.mxu0 0
        %837 = vmatpush1.bf16.msra.mxu0 0
        %838 = vmatprep.subr.bf16.mxu0 0
        %839 = vmatpush1.bf16.msra.mxu0 0
        %840 = vmatprep.subr.bf16.mxu0 0
        %841 = vmatpush1.bf16.msra.mxu0 0
        %842 = vmatprep.subr.bf16.mxu0 0
        %843 = vmatpush1.bf16.msra.mxu0 0
        %844 = vmatprep.subr.bf16.mxu0 0
        %845 = vmatpush1.bf16.msra.mxu0 0
        %846 = vmatprep.subr.bf16.mxu0 0
        %847 = vmatpush1.bf16.msra.mxu0 0
        %848 = vmatprep.subr.bf16.mxu0 0
        %849 = vmatpush1.bf16.msra.mxu0 0
        %850 = vmatprep.subr.bf16.mxu0 0
        %851 = vmatpush1.bf16.msra.mxu0 0
        %852 = vmatprep.mubr.bf16.mxu0 0
        %853 = vmatmul.mubr.bf16.gmra.mrb[0].mxu0 %v815
        %v854 = vpop.f32.mrb[0].mxu0
        %v855 = vadd.f32 0.0, %v854
        %v856 = vpop.f32.mrb[0].mxu0
        %v857 = vpop.f32.mrb[0].mxu0
        %v858 = vpop.f32.mrb[0].mxu0
        %859 = vdwg.mxu0
        %v860 = vrcp.pop %v810
        %v861 = vmul.f32 %v855, %v860
        %v862 = vpack.c.bf16 %v861, %v861
        %v864 = vunpack.c.l.b16 %v862
        %v865 = vpack.c.b16 %v864, %v864
        %866 = vrot.lane.b32.xlu0 %v865, 16
        %v867 = vpop.permute.xlu0 %866
        %vm869 = vcmask 191616
        %870 = vst.msk [vmem:[#allocation3] sm:$0xf] %vm869, %v867
        %v871 = vld [vmem:[#allocation2] sm:$0xf]
        %872 = vrot.lane.b32.xlu0 %v501, 104
        %v873 = vpop.permute.xlu0 %872
        %v875 = vunpack.c.l.b16 %v871
        %v876 = vpack.c.b16 %v875, %v875
        %877 = vrot.lane.b32.xlu0 %v876, 104
        %v878 = vpop.permute.xlu0 %877
        %v880 = vsel %vm510, %v873, 0
        %v883 = vsel %vm510, %v878, 0
        %885 = vmatprep.subr.bf16.mxu0 0
        %886 = vmatpush1.bf16.xpose.msra.mxu0 %v883
        %887 = vmatprep.subr.bf16.mxu0 0
        %888 = vmatpush1.bf16.xpose.msra.mxu0 0
        %889 = vmatprep.subr.bf16.mxu0 0
        %890 = vmatpush1.bf16.xpose.msra.mxu0 0
        %891 = vmatprep.subr.bf16.mxu0 0
        %892 = vmatpush1.bf16.xpose.msra.mxu0 0
        %893 = vmatprep.subr.bf16.mxu0 0
        %894 = vmatpush1.bf16.xpose.msra.mxu0 0
        %895 = vmatprep.subr.bf16.mxu0 0
        %896 = vmatpush1.bf16.xpose.msra.mxu0 0
        %897 = vmatprep.subr.bf16.mxu0 0
        %898 = vmatpush1.bf16.xpose.msra.mxu0 0
        %899 = vmatprep.subr.bf16.mxu0 0
        %900 = vmatpush1.bf16.xpose.msra.mxu0 0
        %901 = vmatprep.subr.bf16.mxu0 0
        %902 = vmatpush1.bf16.xpose.msra.mxu0 0
        %903 = vmatprep.subr.bf16.mxu0 0
        %904 = vmatpush1.bf16.xpose.msra.mxu0 0
        %905 = vmatprep.subr.bf16.mxu0 0
        %906 = vmatpush1.bf16.xpose.msra.mxu0 0
        %907 = vmatprep.subr.bf16.mxu0 0
        %908 = vmatpush1.bf16.xpose.msra.mxu0 0
        %909 = vmatprep.subr.bf16.mxu0 0
        %910 = vmatpush1.bf16.xpose.msra.mxu0 0
        %911 = vmatprep.subr.bf16.mxu0 0
        %912 = vmatpush1.bf16.xpose.msra.mxu0 0
        %913 = vmatprep.subr.bf16.mxu0 0
        %914 = vmatpush1.bf16.xpose.msra.mxu0 0
        %915 = vmatprep.subr.bf16.mxu0 0
        %916 = vmatpush1.bf16.xpose.msra.mxu0 0
        %917 = vmatprep.mubr.bf16.mxu0 0
        %918 = vmatmul.mubr.bf16.gmra.mrb[0].mxu0 %v880
        %v919 = vpop.f32.mrb[0].mxu0
        %v920 = vadd.f32 %v508, %v919
        %v921 = vpop.f32.mrb[0].mxu0
        %v922 = vpop.f32.mrb[0].mxu0
        %v923 = vpop.f32.mrb[0].mxu0
        %924 = vdwg.mxu0
        %v925 = vsel %vm510, %v920, -inf
        %926 = vmax.xlane.f32.xlu0 %v925
        %v927 = vpop.xlane.xlu0 %926
        %v928 = vsub.f32 %v920, %v927
        %v929 = vmul.f32 %v928, 1.442695
        %v930 = vpow.pop %v929
        %v931 = vsel %vm510, %v930, 0.0
        %932 = vadd.xlane.f32.xlu0 %v931
        %v933 = vpop.xlane.xlu0 %932
        %v934 = vpack.c.bf16 %v930, %v930
        %935 = vrot.lane.b32.xlu0 %v876, 72
        %v936 = vpop.permute.xlu0 %935
        %v938 = vsel %vm510, %v934, 0
        %v941 = vsel %vm575, %v936, 0
        %943 = vmatprep.subr.bf16.mxu0 0
        %944 = vmatpush1.bf16.msra.mxu0 %v941
        %945 = vmatprep.subr.bf16.mxu0 0
        %946 = vmatpush1.bf16.msra.mxu0 0
        %947 = vmatprep.subr.bf16.mxu0 0
        %948 = vmatpush1.bf16.msra.mxu0 0
        %949 = vmatprep.subr.bf16.mxu0 0
        %950 = vmatpush1.bf16.msra.mxu0 0
        %951 = vmatprep.subr.bf16.mxu0 0
        %952 = vmatpush1.bf16.msra.mxu0 0
        %953 = vmatprep.subr.bf16.mxu0 0
        %954 = vmatpush1.bf16.msra.mxu0 0
        %955 = vmatprep.subr.bf16.mxu0 0
        %956 = vmatpush1.bf16.msra.mxu0 0
        %957 = vmatprep.subr.bf16.mxu0 0
        %958 = vmatpush1.bf16.msra.mxu0 0
        %959 = vmatprep.subr.bf16.mxu0 0
        %960 = vmatpush1.bf16.msra.mxu0 0
        %961 = vmatprep.subr.bf16.mxu0 0
        %962 = vmatpush1.bf16.msra.mxu0 0
        %963 = vmatprep.subr.bf16.mxu0 0
        %964 = vmatpush1.bf16.msra.mxu0 0
        %965 = vmatprep.subr.bf16.mxu0 0
        %966 = vmatpush1.bf16.msra.mxu0 0
        %967 = vmatprep.subr.bf16.mxu0 0
        %968 = vmatpush1.bf16.msra.mxu0 0
        %969 = vmatprep.subr.bf16.mxu0 0
        %970 = vmatpush1.bf16.msra.mxu0 0
        %971 = vmatprep.subr.bf16.mxu0 0
        %972 = vmatpush1.bf16.msra.mxu0 0
        %973 = vmatprep.subr.bf16.mxu0 0
        %974 = vmatpush1.bf16.msra.mxu0 0
        %975 = vmatprep.mubr.bf16.mxu0 0
        %976 = vmatmul.mubr.bf16.gmra.mrb[0].mxu0 %v938
        %v977 = vpop.f32.mrb[0].mxu0
        %v978 = vadd.f32 0.0, %v977
        %v979 = vpop.f32.mrb[0].mxu0
        %v980 = vpop.f32.mrb[0].mxu0
        %v981 = vpop.f32.mrb[0].mxu0
        %982 = vdwg.mxu0
        %v983 = vrcp.pop %v933
        %v984 = vmul.f32 %v978, %v983
        %v985 = vpack.c.bf16 %v984, %v984
        %v987 = vunpack.c.l.b16 %v985
        %v988 = vpack.c.b16 %v987, %v987
        %989 = vrot.lane.b32.xlu0 %v988, 24
        %v990 = vpop.permute.xlu0 %989
        %vm992 = vcmask 257216
        %993 = vst.msk [vmem:[#allocation3] sm:$0xf] %vm992, %v990
        %v994 = vld [vmem:[#allocation3] sm:$0xf]
        %v995 = vld [vmem:[#allocation10] sm:$0xf]
        %v996 = vld [vmem:[#allocation10 + $0x4] sm:$0xf]
        %v997 = vld [vmem:[#allocation10 + $0x8] sm:$0xf]
        %v998 = vld [vmem:[#allocation10 + $0xc] sm:$0xf]
        %v999 = vunpack.c.l.bf16 %v440
        %v1004 = vunpack.c.l.b16 %v995
        %v1005 = vunpack.c.l.b16 %v996
        %v1006 = vunpack.c.l.b16 %v997
        %v1007 = vunpack.c.l.b16 %v998
        %v1008 = vpack.c.b16 %v1005, %v1004
        %v1009 = vpack.c.b16 %v1007, %v1006
        %v1013 = vsel %vm457, %v994, 0
        %1015 = vmatprep.subr.bf16.mxu0 0
        %1016 = vmatpush1.bf16.msra.mxu0 %v1008
        %1017 = vmatprep.subr.bf16.mxu0 0
        %1018 = vmatpush1.bf16.msra.mxu0 %v1009
        %1019 = vmatprep.subr.bf16.mxu0 0
        %1020 = vmatpush1.bf16.msra.mxu0 0
        %1021 = vmatprep.subr.bf16.mxu0 0
        %1022 = vmatpush1.bf16.msra.mxu0 0
        %1023 = vmatprep.subr.bf16.mxu0 0
        %1024 = vmatpush1.bf16.msra.mxu0 0
        %1025 = vmatprep.subr.bf16.mxu0 0
        %1026 = vmatpush1.bf16.msra.mxu0 0
        %1027 = vmatprep.subr.bf16.mxu0 0
        %1028 = vmatpush1.bf16.msra.mxu0 0
        %1029 = vmatprep.subr.bf16.mxu0 0
        %1030 = vmatpush1.bf16.msra.mxu0 0
        %1031 = vmatprep.subr.bf16.mxu0 0
        %1032 = vmatpush1.bf16.msra.mxu0 0
        %1033 = vmatprep.subr.bf16.mxu0 0
        %1034 = vmatpush1.bf16.msra.mxu0 0
        %1035 = vmatprep.subr.bf16.mxu0 0
        %1036 = vmatpush1.bf16.msra.mxu0 0
        %1037 = vmatprep.subr.bf16.mxu0 0
        %1038 = vmatpush1.bf16.msra.mxu0 0
        %1039 = vmatprep.subr.bf16.mxu0 0
        %1040 = vmatpush1.bf16.msra.mxu0 0
        %1041 = vmatprep.subr.bf16.mxu0 0
        %1042 = vmatpush1.bf16.msra.mxu0 0
        %1043 = vmatprep.subr.bf16.mxu0 0
        %1044 = vmatpush1.bf16.msra.mxu0 0
        %1045 = vmatprep.subr.bf16.mxu0 0
        %1046 = vmatpush1.bf16.msra.mxu0 0
        %1047 = vmatprep.mubr.bf16.mxu0 0
        %1048 = vmatmul.mubr.bf16.gmra.mrb[0].mxu0 %v1013
        %v1049 = vpop.f32.mrb[0].mxu0
        %v1050 = vadd.f32 %v999, %v1049
        %v1051 = vpop.f32.mrb[0].mxu0
        %v1052 = vpop.f32.mrb[0].mxu0
        %v1053 = vpop.f32.mrb[0].mxu0
        %1054 = vdwg.mxu0
        %v1055 = vsel %vm457, %v1050, 0.0
        %1056 = vadd.xlane.f32.xlu0 %v1055
        %v1057 = vpop.xlane.xlu0 %1056
        %v1058 = vrcp.pop 32.0
        %v1059 = vmul.f32 %v1057, %v1058
        %v1060 = vsub.f32 %v1050, %v1059
        %v1061 = vmul.f32 %v1060, %v1060
        %v1062 = vsel %vm457, %v1061, 0.0
        %1063 = vadd.xlane.f32.xlu0 %v1062
        %v1064 = vpop.xlane.xlu0 %1063
        %v1065 = vmul.f32 %v1064, %v1058
        %v1066 = vadd.f32 %v1065, 1e-12
        %v1067 = vrsqrt.pop %v1066
        %v1068 = vmul.f32 %v1060, %v1067
        %v1069 = vld [vmem:[%s5] sm:$0x1]
        %v1071 = vlaneseq
        %v1072 = vshrl.u32 %v1071, 7
        %v1073 = vsub.s32 0, %v1072
        %v1074 = vrot.slane %v1069, %v1073
        %v1076 = vmul.f32 %v1074, %v1068
        %v1077 = vld [vmem:[%s6] sm:$0x1]
        %v1079 = vlaneseq
        %v1080 = vshrl.u32 %v1079, 7
        %v1081 = vsub.s32 0, %v1080
        %v1082 = vrot.slane %v1077, %v1081
        %v1084 = vadd.f32 %v1076, %v1082
        %1085 = vst.msk [vmem:[%s362] sm:$0xff] %vm457, %v1084
        %s1086 = sand.u32 %s205, 1
        %s1087 = scalar_lea.sflag [#allocation6], %s1086
        %s1088 = sand.u32 %s205, 1
        %s1089 = smul.addr %s1088, 8
        %s1090 = scalar_lea.vmem [#allocation12], %s1089
        // Predicated region
        $region69: #{tpu_custom_call.1} parent=47 // pred_check
          %p1091 = pneg %p215
        $region70: #{tpu_custom_call.1} parent=47 // pred_check_branch
          %1093 = sbr.rel (%p1091) target = $region72
        $region71: #{tpu_custom_call.1} parent=47 // pred_region
          %s1095 = ssub.s32 128, 128
          %1096 = vsyncadd %s1087, %s1095
          %s1097 = sadd.s32 %s31, %s30
          %s1098 = smul.addr %s1097, 128
          %s1099 = scalar_lea.hbm %s7, %s1098
          %s1101 = sshll.u32 %s1090, 4
          %s1102 = int_to_ptr.vmem [resolvable:$true] %s1101
          %1104 = dma.vmem_to_hbm [thread:$0]  %s1102, 128, %s1099, %s1087
        $region72: #{tpu_custom_call.1} parent=47 // pred_fallthru
          _
      $region48: #{tpu_custom_call.1} parent=5 // pred_fallthru
        _
      %p1105 = scmp.le.s32.totalorder 2, %s21
      // Predicated region
      $region73: #{tpu_custom_call.1} parent=5 // pred_check
        %p1106 = pneg %p1105
      $region74: #{tpu_custom_call.1} parent=5 // pred_check_branch
        %1108 = sbr.rel (%p1106) target = $region76
      $region75: #{tpu_custom_call.1} parent=5 // pred_region
        %s1109 = ssub.s32 %s21, 2
        // Predicated region
        $region77: #{tpu_custom_call.1} parent=75 // pred_check
          %p1110 = pneg %p221
        $region78: #{tpu_custom_call.1} parent=75 // pred_check_branch
          %1112 = sbr.rel (%p1110) target = $region80
        $region79: #{tpu_custom_call.1} parent=75 // pred_region
          %s1113 = sand.u32 %s206, 1
          %s1114 = scalar_lea.sflag [#allocation6], %s1113
          %s1115 = sand.u32 %s206, 1
          %s1116 = smul.addr %s1115, 8
          %s1117 = scalar_lea.vmem [#allocation12], %s1116
          %1118 = dma.done %s1114, 128
        $region80: #{tpu_custom_call.1} parent=75 // pred_fallthru
          _
      $region76: #{tpu_custom_call.1} parent=5 // pred_fallthru
        _
    $region6: #{tpu_custom_call.1} parent=1 // loop_footer
      %s25 = sadd.s32 1, %s21
    $region7: #{tpu_custom_call.1} parent=1 // loop_footer_branch
      %20 = sbr.rel target = $region3
    $region8: #{tpu_custom_call.1} parent=1 // loop_exit
      _
    %1119 = vsyncpa [#allocation5], 1
    %s1120 = scalar_lea.sflag [#allocation5], 1
    %1121 = vsyncpa %s1120, 1
    %1122 = vsyncpa [#allocation8], 1
    %1123 = vsyncpa [#allocation11], 1
    %1124 = vsyncpa [#allocation6], 1
    %s1125 = scalar_lea.sflag [#allocation6], 1
    %1126 = vsyncpa %s1125, 1

</llo_original>
